<compile_context>
chip_gen: v7x
topology: tpu7x:2x2x1
jax: 0.10.0
libtpu: 0.0.40
codegen_flags: <defaults>
</compile_context>

<pallas_src>
import jax
import jax.numpy as jnp
from jax.experimental import pallas as pl
from jax.experimental.pallas import tpu as pltpu


def _conv1x1_kernel(x_ref, w_ref, b_ref, o_ref):
    # x_ref: (M_pad, Cin) f32
    # w_ref: (Cin, tn)    f32 or bf16  (lane-dense, standard [K, N] MXU operand)
    # b_ref: (1, tn)      f32
    # o_ref: (M_pad, tn)  f32
    x = x_ref[...]
    w = w_ref[...]
    if x.dtype != w.dtype:
        # bf16-weight path: cast the tiny activation tile (8x160) so the MXU runs a
        # native bf16 x bf16 matmul; accumulation stays f32.
        x = x.astype(w.dtype)
    acc = jnp.dot(x, w, preferred_element_type=jnp.float32)
    o_ref[...] = acc + b_ref[...]


def conv2d_1x1(x_nchw, weight, bias, *, cout_tiles=1, core_parallel=False,
               weight_dtype=None):
    """1x1 stride-1 Conv2d for 1x1 spatial input via a Pallas matmul.

    x_nchw:       [N, Cin, 1, 1]  (float32)
    weight:       [Cout, Cin, 1, 1]  (PyTorch layout; transposed once here)
    bias:         [Cout]
    cout_tiles:   1 (default, single-shot) or 2 (split Cout; for v7x megacore)
    core_parallel: with cout_tiles>1, use CORE_PARALLEL so the split lands on both
                  v7x TensorCores (leave False on single-TC v5e/v6e).
    weight_dtype: e.g. jnp.bfloat16 to halve weight DMA bytes (f32 accumulation kept).
    returns [N, Cout, 1, 1] float32
    """
    N, Cin, H, W = x_nchw.shape
    assert H == 1 and W == 1, "kernel specialized for 1x1 spatial (as in module M)"
    Cout = weight.shape[0]
    assert Cout % cout_tiles == 0
    tn = Cout // cout_tiles

    # --- one-time parameter prep (would live at model init, not per call) --------
    w_kn = weight.reshape(Cout, Cin).T            # [Cin, Cout], lane-dense RHS
    if weight_dtype is not None:
        w_kn = w_kn.astype(weight_dtype)
    b2d = bias.reshape(1, Cout).astype(jnp.float32)

    # --- activations: pad batch up to 8 sublanes ---------------------------------
    x2d = x_nchw.reshape(N, Cin).astype(jnp.float32)
    M_pad = ((N + 7) // 8) * 8
    if M_pad != N:
        x2d = jnp.zeros((M_pad, Cin), x2d.dtype).at[:N].set(x2d)

    w_itemsize = jnp.dtype(w_kn.dtype).itemsize
    cost = pl.CostEstimate(
        flops=2 * M_pad * Cin * Cout,
        transcendentals=0,
        bytes_accessed=(M_pad * Cin * 4 + Cout * Cin * w_itemsize
                        + Cout * 4 + M_pad * Cout * 4),
    )

    if cout_tiles == 1:
        # Single-shot, grid-less call: whole arrays pinned in VMEM, no pipeline
        # double-buffering, no per-grid-step overhead.
        out_pad = pl.pallas_call(
            _conv1x1_kernel,
            out_shape=jax.ShapeDtypeStruct((M_pad, Cout), jnp.float32),
            in_specs=[
                pl.BlockSpec(memory_space=pltpu.MemorySpace.VMEM),  # x  (8, 160)
                pl.BlockSpec(memory_space=pltpu.MemorySpace.VMEM),  # w  (160, 3840)
                pl.BlockSpec(memory_space=pltpu.MemorySpace.VMEM),  # b  (1, 3840)
            ],
            out_specs=pl.BlockSpec(memory_space=pltpu.MemorySpace.VMEM),
            cost_estimate=cost,
        )(x2d, w_kn, b2d)
    else:
        # Cout split across grid steps; on v7x pass core_parallel=True so each
        # TensorCore pulls half of the weight (halves the exposed DMA).
        dim_sem = (pltpu.CORE_PARALLEL if core_parallel else pltpu.PARALLEL,)
        out_pad = pl.pallas_call(
            _conv1x1_kernel,
            out_shape=jax.ShapeDtypeStruct((M_pad, Cout), jnp.float32),
            grid_spec=pl.GridSpec(
                grid=(cout_tiles,),
                in_specs=[
                    pl.BlockSpec((M_pad, Cin), lambda j: (0, 0)),   # activations
                    pl.BlockSpec((Cin, tn), lambda j: (0, j)),      # weight [K, N]
                    pl.BlockSpec((1, tn), lambda j: (0, j)),        # bias
                ],
                out_specs=pl.BlockSpec((M_pad, tn), lambda j: (0, j)),
            ),
            compiler_params=pltpu.CompilerParams(dimension_semantics=dim_sem),
            cost_estimate=cost,
        )(x2d, w_kn, b2d)

    return out_pad[:N].reshape(N, Cout, 1, 1)


if __name__ == "__main__":
    key = jax.random.PRNGKey(0)
    k_x, k_w, k_b = jax.random.split(key, 3)

    N, Cin, Cout = 1, 160, 3840
    x = jax.random.normal(k_x, (N, Cin, 1, 1), dtype=jnp.float32)
    # Deterministic synthetic parameters (PyTorch Conv2d-like uniform init scale).
    bound = 1.0 / (Cin ** 0.5)
    weight = jax.random.uniform(k_w, (Cout, Cin, 1, 1), jnp.float32, -bound, bound)
    bias = jax.random.uniform(k_b, (Cout,), jnp.float32, -bound, bound)

    # Plain-JAX reference (matches the PyTorch module's f32 numerics).
    ref = (jnp.einsum("nc,oc->no", x.reshape(N, Cin), weight.reshape(Cout, Cin))
           + bias[None, :]).reshape(N, Cout, 1, 1)

    # 1) default f32, single-shot, grid-less path.
    out_f32 = jax.block_until_ready(conv2d_1x1(x, weight, bias))
    assert out_f32.shape == (N, Cout, 1, 1)
    assert jnp.allclose(out_f32, ref, atol=1e-4, rtol=1e-4)

    # 2) bf16-weight path (halves the weight DMA, f32 accumulation kept).
    out_bf16 = jax.block_until_ready(
        conv2d_1x1(x, weight, bias, weight_dtype=jnp.bfloat16))
    assert jnp.allclose(out_bf16, ref, atol=3e-2, rtol=3e-2)

    # 3) Cout-split path (portable PARALLEL here; pass core_parallel=True on v7x).
    out_split = jax.block_until_ready(conv2d_1x1(x, weight, bias, cout_tiles=2))
    assert jnp.allclose(out_split, ref, atol=1e-4, rtol=1e-4)

    print("KERNEL_OK")
</pallas_src>

<mosaic_0001>
module attributes {stable_mosaic.version = 11 : i64} {
  func.func @_conv1x1_kernel(%arg0: memref<8x160xf32, #tpu.memory_space<vmem>>, %arg1: memref<160x3840xf32, #tpu.memory_space<vmem>>, %arg2: memref<1x3840xf32, #tpu.memory_space<vmem>>, %arg3: memref<8x3840xf32, #tpu.memory_space<vmem>>) attributes {dimension_semantics = [], scalar_prefetch = 0 : i64, scratch_operands = 0 : i64, tpu.core_type = #tpu.core_type<tc>} {
    %c0 = arith.constant 0 : index
    %c0_0 = arith.constant 0 : index
    %0 = vector.load %arg0[%c0, %c0_0] : memref<8x160xf32, #tpu.memory_space<vmem>>, vector<8x160xf32>
    %c0_1 = arith.constant 0 : index
    %c0_2 = arith.constant 0 : index
    %1 = vector.load %arg1[%c0_1, %c0_2] : memref<160x3840xf32, #tpu.memory_space<vmem>>, vector<160x3840xf32>
    %cst = arith.constant dense<0.000000e+00> : vector<8x3840xf32>
    %2 = tpu.matmul %0, %1, %cst {dimension_numbers = #tpu.dot_dimension_numbers<[1], [0], [0], [1], [0, 0, 1, 1], [], []>} : vector<8x160xf32>, vector<160x3840xf32>, vector<8x3840xf32> -> vector<8x3840xf32>
    %c0_3 = arith.constant 0 : index
    %c0_4 = arith.constant 0 : index
    %3 = vector.load %arg2[%c0_3, %c0_4] : memref<1x3840xf32, #tpu.memory_space<vmem>>, vector<1x3840xf32>
    %4 = vector.broadcast %3 : vector<1x3840xf32> to vector<8x3840xf32>
    %5 = arith.addf %2, %4 : vector<8x3840xf32>
    %c0_5 = arith.constant 0 : index
    %c0_6 = arith.constant 0 : index
    %6 = vector.load %arg3[%c0_5, %c0_6] : memref<8x3840xf32, #tpu.memory_space<vmem>>, vector<8x3840xf32>
    tpu.vector_store %arg3[%c0_5, %c0_6], %5 {strides = array<i32>} : memref<8x3840xf32, #tpu.memory_space<vmem>>, vector<8x3840xf32>,
    return
  }
}

</mosaic_0001>

<llo_original>
// kernel: tpu_custom_call.1
$region0: #{tpu_custom_call.1}
  #allocation0 [shape = 'u32[]', space=smem, size = 0x4, offset = 0x4, fixed_abs, tag = 'smem constant byte address 0x4 - core index']
  #allocation1 [shape = 'u32[144,128]{1,0:T(1,128)}', space=vmem, size = 0x12000, scoped, tag = 'internal scratch']
  %s0 = inlined_call_operand.hbm [shape: f32[8,160], index: 0, kind: input, shape index: {}]
  %s1 = inlined_call_operand.hbm [shape: f32[160,3840], index: 1, kind: input, shape index: {}]
  %s2 = inlined_call_operand.hbm [shape: f32[1,3840], index: 2, kind: input, shape index: {}]
  %s3 = inlined_call_operand.hbm [shape: f32[8,3840], index: 3, kind: output, shape index: {}]
  %s4 = sld [smem:[#allocation0]]
  $region34: #{tpu_custom_call.1} parent=0
    _
  %s6 = ssub.s32 1, %s4
  %s7 = scalar_select 0, %s6, %s4
  $region1: #{tpu_custom_call.1} parent=0
    #allocation2 [shape = 'u8[8192]{0}', space=vmem, size = 0x2000, scoped, tag = 'input window, operand 0, single buffered']
    #allocation3 [shape = 's32[1]{0}', space=sflag, size = 0x4, scoped, tag = 'scoped memory for tpu_custom_call.1']
    #allocation4 [shape = 's32[1]{0}', space=sflag, size = 0x4, scoped, tag = 'scoped memory for tpu_custom_call.1']
    #allocation5 [shape = 'u8[2457600]{0}', space=vmem, size = 0x258000, scoped, tag = 'input window, operand 1, single buffered']
    #allocation6 [shape = 's32[1]{0}', space=sflag, size = 0x4, scoped, tag = 'scoped memory for tpu_custom_call.1']
    #allocation7 [shape = 'u8[15360]{0}', space=vmem, size = 0x3c00, scoped, tag = 'input window, operand 2, single buffered']
    #allocation8 [shape = 'u8[122880]{0}', space=vmem, size = 0x1e000, scoped, tag = 'output window, operand 0, single buffered']
    %8 = vsyncpa [#allocation3], 0
    %9 = vsyncpa [#allocation6], 0
    %10 = vsyncpa [#allocation4], 0
    // Predicated region
    $region2: #{tpu_custom_call.1} parent=1 // pred_check
      _
    $region3: #{tpu_custom_call.1} parent=1 // pred_check_branch
      %12 = sbr.rel (0) target = $region5
    $region4: #{tpu_custom_call.1} parent=1 // pred_region
      %s14 = ssub.s32 256, 256
      %15 = vsyncadd [#allocation3], %s14
      %s17 = sshll.u32 [#allocation2], 4
      %s18 = int_to_ptr.vmem [resolvable:$true] %s17
      %20 = dma.hbm_to_vmem [thread:$0]  %s0, 256, %s18, [#allocation3]
    $region5: #{tpu_custom_call.1} parent=1 // pred_fallthru
      _
    // Predicated region
    $region6: #{tpu_custom_call.1} parent=1 // pred_check
      _
    $region7: #{tpu_custom_call.1} parent=1 // pred_check_branch
      %22 = sbr.rel (0) target = $region9
    $region8: #{tpu_custom_call.1} parent=1 // pred_region
      %s24 = ssub.s32 76800, 76800
      %25 = vsyncadd [#allocation6], %s24
      %s26 = sshll.u32 [#allocation5], 4
      %s27 = int_to_ptr.vmem [resolvable:$true] %s26
      %32 = dma.hbm_to_vmem [thread:$0]  %s1, 76800, %s27, [#allocation6], 3840, 3840, 240
    $region9: #{tpu_custom_call.1} parent=1 // pred_fallthru
      _
    // Predicated region
    $region10: #{tpu_custom_call.1} parent=1 // pred_check
      _
    $region11: #{tpu_custom_call.1} parent=1 // pred_check_branch
      %34 = sbr.rel (0) target = $region13
    $region12: #{tpu_custom_call.1} parent=1 // pred_region
      %s36 = ssub.s32 480, 480
      %37 = vsyncadd [#allocation6], %s36
      %s39 = sshll.u32 [#allocation7], 4
      %s40 = int_to_ptr.vmem [resolvable:$true] %s39
      %42 = dma.hbm_to_vmem [thread:$0]  %s2, 480, %s40, [#allocation6]
    $region13: #{tpu_custom_call.1} parent=1 // pred_fallthru
      _
    // Predicated region
    $region14: #{tpu_custom_call.1} parent=1 // pred_check
      _
    $region15: #{tpu_custom_call.1} parent=1 // pred_check_branch
      %44 = sbr.rel (0) target = $region17
    $region16: #{tpu_custom_call.1} parent=1 // pred_region
      %45 = dma.done [#allocation3], 256
    $region17: #{tpu_custom_call.1} parent=1 // pred_fallthru
      _
    // Predicated region
    $region18: #{tpu_custom_call.1} parent=1 // pred_check
      _
    $region19: #{tpu_custom_call.1} parent=1 // pred_check_branch
      %47 = sbr.rel (0) target = $region21
    $region20: #{tpu_custom_call.1} parent=1 // pred_region
      %48 = dma.done [#allocation6], 76800
    $region21: #{tpu_custom_call.1} parent=1 // pred_fallthru
      _
    // Predicated region
    $region22: #{tpu_custom_call.1} parent=1 // pred_check
      _
    $region23: #{tpu_custom_call.1} parent=1 // pred_check_branch
      %50 = sbr.rel (0) target = $region25
    $region24: #{tpu_custom_call.1} parent=1 // pred_region
      %51 = dma.done [#allocation6], 480
    $region25: #{tpu_custom_call.1} parent=1 // pred_fallthru
      _
    %v52 = vld [vmem:[#allocation2] sm:$0xff]
    %v53 = vld [vmem:[#allocation2 + $0x8] sm:$0xff]
    %v54 = vld [vmem:[#allocation5] sm:$0xff]
    %v55 = vld [vmem:[#allocation5 + $0x8] sm:$0xff]
    %v56 = vld [vmem:[#allocation5 + $0x10] sm:$0xff]
    %v57 = vld [vmem:[#allocation5 + $0x18] sm:$0xff]
    %v58 = vld [vmem:[#allocation5 + $0x20] sm:$0xff]
    %v59 = vld [vmem:[#allocation5 + $0x28] sm:$0xff]
    %v60 = vld [vmem:[#allocation5 + $0x30] sm:$0xff]
    %v61 = vld [vmem:[#allocation5 + $0x38] sm:$0xff]
    %v62 = vld [vmem:[#allocation5 + $0x40] sm:$0xff]
    %v63 = vld [vmem:[#allocation5 + $0x48] sm:$0xff]
    %v64 = vld [vmem:[#allocation5 + $0x50] sm:$0xff]
    %v65 = vld [vmem:[#allocation5 + $0x58] sm:$0xff]
    %v66 = vld [vmem:[#allocation5 + $0x60] sm:$0xff]
    %v67 = vld [vmem:[#allocation5 + $0x68] sm:$0xff]
    %v68 = vld [vmem:[#allocation5 + $0x70] sm:$0xff]
    %v69 = vld [vmem:[#allocation5 + $0x78] sm:$0xff]
    %v70 = vld [vmem:[#allocation5 + $0x80] sm:$0xff]
    %v71 = vld [vmem:[#allocation5 + $0x88] sm:$0xff]
    %v72 = vld [vmem:[#allocation5 + $0x90] sm:$0xff]
    %v73 = vld [vmem:[#allocation5 + $0x98] sm:$0xff]
    %v74 = vld [vmem:[#allocation5 + $0xa0] sm:$0xff]
    %v75 = vld [vmem:[#allocation5 + $0xa8] sm:$0xff]
    %v76 = vld [vmem:[#allocation5 + $0xb0] sm:$0xff]
    %v77 = vld [vmem:[#allocation5 + $0xb8] sm:$0xff]
    %v78 = vld [vmem:[#allocation5 + $0xc0] sm:$0xff]
    %v79 = vld [vmem:[#allocation5 + $0xc8] sm:$0xff]
    %v80 = vld [vmem:[#allocation5 + $0xd0] sm:$0xff]
    %v81 = vld [vmem:[#allocation5 + $0xd8] sm:$0xff]
    %v82 = vld [vmem:[#allocation5 + $0xe0] sm:$0xff]
    %v83 = vld [vmem:[#allocation5 + $0xe8] sm:$0xff]
    %v84 = vld [vmem:[#allocation5 + $0xf0] sm:$0xff]
    %v85 = vld [vmem:[#allocation5 + $0xf8] sm:$0xff]
    %v86 = vld [vmem:[#allocation5 + $0x100] sm:$0xff]
    %v87 = vld [vmem:[#allocation5 + $0x108] sm:$0xff]
    %v88 = vld [vmem:[#allocation5 + $0x110] sm:$0xff]
    %v89 = vld [vmem:[#allocation5 + $0x118] sm:$0xff]
    %v90 = vld [vmem:[#allocation5 + $0x120] sm:$0xff]
    %v91 = vld [vmem:[#allocation5 + $0x128] sm:$0xff]
    %v92 = vld [vmem:[#allocation5 + $0x130] sm:$0xff]
    %v93 = vld [vmem:[#allocation5 + $0x138] sm:$0xff]
    %v94 = vld [vmem:[#allocation5 + $0x140] sm:$0xff]
    %v95 = vld [vmem:[#allocation5 + $0x148] sm:$0xff]
    %v96 = vld [vmem:[#allocation5 + $0x150] sm:$0xff]
    %v97 = vld [vmem:[#allocation5 + $0x158] sm:$0xff]
    %v98 = vld [vmem:[#allocation5 + $0x160] sm:$0xff]
    %v99 = vld [vmem:[#allocation5 + $0x168] sm:$0xff]
    %v100 = vld [vmem:[#allocation5 + $0x170] sm:$0xff]
    %v101 = vld [vmem:[#allocation5 + $0x178] sm:$0xff]
    %v102 = vld [vmem:[#allocation5 + $0x180] sm:$0xff]
    %v103 = vld [vmem:[#allocation5 + $0x188] sm:$0xff]
    %v104 = vld [vmem:[#allocation5 + $0x190] sm:$0xff]
    %v105 = vld [vmem:[#allocation5 + $0x198] sm:$0xff]
    %v106 = vld [vmem:[#allocation5 + $0x1a0] sm:$0xff]
    %v107 = vld [vmem:[#allocation5 + $0x1a8] sm:$0xff]
    %v108 = vld [vmem:[#allocation5 + $0x1b0] sm:$0xff]
    %v109 = vld [vmem:[#allocation5 + $0x1b8] sm:$0xff]
    %v110 = vld [vmem:[#allocation5 + $0x1c0] sm:$0xff]
    %v111 = vld [vmem:[#allocation5 + $0x1c8] sm:$0xff]
    %v112 = vld [vmem:[#allocation5 + $0x1d0] sm:$0xff]
    %v113 = vld [vmem:[#allocation5 + $0x1d8] sm:$0xff]
    %v114 = vld [vmem:[#allocation5 + $0x1e0] sm:$0xff]
    %v115 = vld [vmem:[#allocation5 + $0x1e8] sm:$0xff]
    %v116 = vld [vmem:[#allocation5 + $0x1f0] sm:$0xff]
    %v117 = vld [vmem:[#allocation5 + $0x1f8] sm:$0xff]
    %v118 = vld [vmem:[#allocation5 + $0x200] sm:$0xff]
    %v119 = vld [vmem:[#allocation5 + $0x208] sm:$0xff]
    %v120 = vld [vmem:[#allocation5 + $0x210] sm:$0xff]
    %v121 = vld [vmem:[#allocation5 + $0x218] sm:$0xff]
    %v122 = vld [vmem:[#allocation5 + $0x220] sm:$0xff]
    %v123 = vld [vmem:[#allocation5 + $0x228] sm:$0xff]
    %v124 = vld [vmem:[#allocation5 + $0x230] sm:$0xff]
    %v125 = vld [vmem:[#allocation5 + $0x238] sm:$0xff]
    %v126 = vld [vmem:[#allocation5 + $0x240] sm:$0xff]
    %v127 = vld [vmem:[#allocation5 + $0x248] sm:$0xff]
    %v128 = vld [vmem:[#allocation5 + $0x250] sm:$0xff]
    %v129 = vld [vmem:[#allocation5 + $0x258] sm:$0xff]
    %v130 = vld [vmem:[#allocation5 + $0x260] sm:$0xff]
    %v131 = vld [vmem:[#allocation5 + $0x268] sm:$0xff]
    %v132 = vld [vmem:[#allocation5 + $0x270] sm:$0xff]
    %v133 = vld [vmem:[#allocation5 + $0x278] sm:$0xff]
    %v134 = vld [vmem:[#allocation5 + $0x280] sm:$0xff]
    %v135 = vld [vmem:[#allocation5 + $0x288] sm:$0xff]
    %v136 = vld [vmem:[#allocation5 + $0x290] sm:$0xff]
    %v137 = vld [vmem:[#allocation5 + $0x298] sm:$0xff]
    %v138 = vld [vmem:[#allocation5 + $0x2a0] sm:$0xff]
    %v139 = vld [vmem:[#allocation5 + $0x2a8] sm:$0xff]
    %v140 = vld [vmem:[#allocation5 + $0x2b0] sm:$0xff]
    %v141 = vld [vmem:[#allocation5 + $0x2b8] sm:$0xff]
    %v142 = vld [vmem:[#allocation5 + $0x2c0] sm:$0xff]
    %v143 = vld [vmem:[#allocation5 + $0x2c8] sm:$0xff]
    %v144 = vld [vmem:[#allocation5 + $0x2d0] sm:$0xff]
    %v145 = vld [vmem:[#allocation5 + $0x2d8] sm:$0xff]
    %v146 = vld [vmem:[#allocation5 + $0x2e0] sm:$0xff]
    %v147 = vld [vmem:[#allocation5 + $0x2e8] sm:$0xff]
    %v148 = vld [vmem:[#allocation5 + $0x2f0] sm:$0xff]
    %v149 = vld [vmem:[#allocation5 + $0x2f8] sm:$0xff]
    %v150 = vld [vmem:[#allocation5 + $0x300] sm:$0xff]
    %v151 = vld [vmem:[#allocation5 + $0x308] sm:$0xff]
    %v152 = vld [vmem:[#allocation5 + $0x310] sm:$0xff]
    %v153 = vld [vmem:[#allocation5 + $0x318] sm:$0xff]
    %v154 = vld [vmem:[#allocation5 + $0x320] sm:$0xff]
    %v155 = vld [vmem:[#allocation5 + $0x328] sm:$0xff]
    %v156 = vld [vmem:[#allocation5 + $0x330] sm:$0xff]
    %v157 = vld [vmem:[#allocation5 + $0x338] sm:$0xff]
    %v158 = vld [vmem:[#allocation5 + $0x340] sm:$0xff]
    %v159 = vld [vmem:[#allocation5 + $0x348] sm:$0xff]
    %v160 = vld [vmem:[#allocation5 + $0x350] sm:$0xff]
    %v161 = vld [vmem:[#allocation5 + $0x358] sm:$0xff]
    %v162 = vld [vmem:[#allocation5 + $0x360] sm:$0xff]
    %v163 = vld [vmem:[#allocation5 + $0x368] sm:$0xff]
    %v164 = vld [vmem:[#allocation5 + $0x370] sm:$0xff]
    %v165 = vld [vmem:[#allocation5 + $0x378] sm:$0xff]
    %v166 = vld [vmem:[#allocation5 + $0x380] sm:$0xff]
    %v167 = vld [vmem:[#allocation5 + $0x388] sm:$0xff]
    %v168 = vld [vmem:[#allocation5 + $0x390] sm:$0xff]
    %v169 = vld [vmem:[#allocation5 + $0x398] sm:$0xff]
    %v170 = vld [vmem:[#allocation5 + $0x3a0] sm:$0xff]
    %v171 = vld [vmem:[#allocation5 + $0x3a8] sm:$0xff]
    %v172 = vld [vmem:[#allocation5 + $0x3b0] sm:$0xff]
    %v173 = vld [vmem:[#allocation5 + $0x3b8] sm:$0xff]
    %v174 = vld [vmem:[#allocation5 + $0x3c0] sm:$0xff]
    %v175 = vld [vmem:[#allocation5 + $0x3c8] sm:$0xff]
    %v176 = vld [vmem:[#allocation5 + $0x3d0] sm:$0xff]
    %v177 = vld [vmem:[#allocation5 + $0x3d8] sm:$0xff]
    %v178 = vld [vmem:[#allocation5 + $0x3e0] sm:$0xff]
    %v179 = vld [vmem:[#allocation5 + $0x3e8] sm:$0xff]
    %v180 = vld [vmem:[#allocation5 + $0x3f0] sm:$0xff]
    %v181 = vld [vmem:[#allocation5 + $0x3f8] sm:$0xff]
    %v182 = vld [vmem:[#allocation5 + $0x400] sm:$0xff]
    %v183 = vld [vmem:[#allocation5 + $0x408] sm:$0xff]
    %v184 = vld [vmem:[#allocation5 + $0x410] sm:$0xff]
    %v185 = vld [vmem:[#allocation5 + $0x418] sm:$0xff]
    %v186 = vld [vmem:[#allocation5 + $0x420] sm:$0xff]
    %v187 = vld [vmem:[#allocation5 + $0x428] sm:$0xff]
    %v188 = vld [vmem:[#allocation5 + $0x430] sm:$0xff]
    %v189 = vld [vmem:[#allocation5 + $0x438] sm:$0xff]
    %v190 = vld [vmem:[#allocation5 + $0x440] sm:$0xff]
    %v191 = vld [vmem:[#allocation5 + $0x448] sm:$0xff]
    %v192 = vld [vmem:[#allocation5 + $0x450] sm:$0xff]
    %v193 = vld [vmem:[#allocation5 + $0x458] sm:$0xff]
    %v194 = vld [vmem:[#allocation5 + $0x460] sm:$0xff]
    %v195 = vld [vmem:[#allocation5 + $0x468] sm:$0xff]
    %v196 = vld [vmem:[#allocation5 + $0x470] sm:$0xff]
    %v197 = vld [vmem:[#allocation5 + $0x478] sm:$0xff]
    %v198 = vld [vmem:[#allocation5 + $0x480] sm:$0xff]
    %v199 = vld [vmem:[#allocation5 + $0x488] sm:$0xff]
    %v200 = vld [vmem:[#allocation5 + $0x490] sm:$0xff]
    %v201 = vld [vmem:[#allocation5 + $0x498] sm:$0xff]
    %v202 = vld [vmem:[#allocation5 + $0x4a0] sm:$0xff]
    %v203 = vld [vmem:[#allocation5 + $0x4a8] sm:$0xff]
    %v204 = vld [vmem:[#allocation5 + $0x4b0] sm:$0xff]
    %v205 = vld [vmem:[#allocation5 + $0x4b8] sm:$0xff]
    %v206 = vld [vmem:[#allocation5 + $0x4c0] sm:$0xff]
    %v207 = vld [vmem:[#allocation5 + $0x4c8] sm:$0xff]
    %v208 = vld [vmem:[#allocation5 + $0x4d0] sm:$0xff]
    %v209 = vld [vmem:[#allocation5 + $0x4d8] sm:$0xff]
    %v210 = vld [vmem:[#allocation5 + $0x4e0] sm:$0xff]
    %v211 = vld [vmem:[#allocation5 + $0x4e8] sm:$0xff]
    %v212 = vld [vmem:[#allocation5 + $0x4f0] sm:$0xff]
    %v213 = vld [vmem:[#allocation5 + $0x4f8] sm:$0xff]
    %v214 = vld [vmem:[#allocation5 + $0x500] sm:$0xff]
    %v215 = vld [vmem:[#allocation5 + $0x508] sm:$0xff]
    %v216 = vld [vmem:[#allocation5 + $0x510] sm:$0xff]
    %v217 = vld [vmem:[#allocation5 + $0x518] sm:$0xff]
    %v218 = vld [vmem:[#allocation5 + $0x520] sm:$0xff]
    %v219 = vld [vmem:[#allocation5 + $0x528] sm:$0xff]
    %v220 = vld [vmem:[#allocation5 + $0x530] sm:$0xff]
    %v221 = vld [vmem:[#allocation5 + $0x538] sm:$0xff]
    %v222 = vld [vmem:[#allocation5 + $0x540] sm:$0xff]
    %v223 = vld [vmem:[#allocation5 + $0x548] sm:$0xff]
    %v224 = vld [vmem:[#allocation5 + $0x550] sm:$0xff]
    %v225 = vld [vmem:[#allocation5 + $0x558] sm:$0xff]
    %v226 = vld [vmem:[#allocation5 + $0x560] sm:$0xff]
    %v227 = vld [vmem:[#allocation5 + $0x568] sm:$0xff]
    %v228 = vld [vmem:[#allocation5 + $0x570] sm:$0xff]
    %v229 = vld [vmem:[#allocation5 + $0x578] sm:$0xff]
    %v230 = vld [vmem:[#allocation5 + $0x580] sm:$0xff]
    %v231 = vld [vmem:[#allocation5 + $0x588] sm:$0xff]
    %v232 = vld [vmem:[#allocation5 + $0x590] sm:$0xff]
    %v233 = vld [vmem:[#allocation5 + $0x598] sm:$0xff]
    %v234 = vld [vmem:[#allocation5 + $0x5a0] sm:$0xff]
    %v235 = vld [vmem:[#allocation5 + $0x5a8] sm:$0xff]
    %v236 = vld [vmem:[#allocation5 + $0x5b0] sm:$0xff]
    %v237 = vld [vmem:[#allocation5 + $0x5b8] sm:$0xff]
    %v238 = vld [vmem:[#allocation5 + $0x5c0] sm:$0xff]
    %v239 = vld [vmem:[#allocation5 + $0x5c8] sm:$0xff]
    %v240 = vld [vmem:[#allocation5 + $0x5d0] sm:$0xff]
    %v241 = vld [vmem:[#allocation5 + $0x5d8] sm:$0xff]
    %v242 = vld [vmem:[#allocation5 + $0x5e0] sm:$0xff]
    %v243 = vld [vmem:[#allocation5 + $0x5e8] sm:$0xff]
    %v244 = vld [vmem:[#allocation5 + $0x5f0] sm:$0xff]
    %v245 = vld [vmem:[#allocation5 + $0x5f8] sm:$0xff]
    %v246 = vld [vmem:[#allocation5 + $0x600] sm:$0xff]
    %v247 = vld [vmem:[#allocation5 + $0x608] sm:$0xff]
    %v248 = vld [vmem:[#allocation5 + $0x610] sm:$0xff]
    %v249 = vld [vmem:[#allocation5 + $0x618] sm:$0xff]
    %v250 = vld [vmem:[#allocation5 + $0x620] sm:$0xff]
    %v251 = vld [vmem:[#allocation5 + $0x628] sm:$0xff]
    %v252 = vld [vmem:[#allocation5 + $0x630] sm:$0xff]
    %v253 = vld [vmem:[#allocation5 + $0x638] sm:$0xff]
    %v254 = vld [vmem:[#allocation5 + $0x640] sm:$0xff]
    %v255 = vld [vmem:[#allocation5 + $0x648] sm:$0xff]
    %v256 = vld [vmem:[#allocation5 + $0x650] sm:$0xff]
    %v257 = vld [vmem:[#allocation5 + $0x658] sm:$0xff]
    %v258 = vld [vmem:[#allocation5 + $0x660] sm:$0xff]
    %v259 = vld [vmem:[#allocation5 + $0x668] sm:$0xff]
    %v260 = vld [vmem:[#allocation5 + $0x670] sm:$0xff]
    %v261 = vld [vmem:[#allocation5 + $0x678] sm:$0xff]
    %v262 = vld [vmem:[#allocation5 + $0x680] sm:$0xff]
    %v263 = vld [vmem:[#allocation5 + $0x688] sm:$0xff]
    %v264 = vld [vmem:[#allocation5 + $0x690] sm:$0xff]
    %v265 = vld [vmem:[#allocation5 + $0x698] sm:$0xff]
    %v266 = vld [vmem:[#allocation5 + $0x6a0] sm:$0xff]
    %v267 = vld [vmem:[#allocation5 + $0x6a8] sm:$0xff]
    %v268 = vld [vmem:[#allocation5 + $0x6b0] sm:$0xff]
    %v269 = vld [vmem:[#allocation5 + $0x6b8] sm:$0xff]
    %v270 = vld [vmem:[#allocation5 + $0x6c0] sm:$0xff]
    %v271 = vld [vmem:[#allocation5 + $0x6c8] sm:$0xff]
    %v272 = vld [vmem:[#allocation5 + $0x6d0] sm:$0xff]
    %v273 = vld [vmem:[#allocation5 + $0x6d8] sm:$0xff]
    %v274 = vld [vmem:[#allocation5 + $0x6e0] sm:$0xff]
    %v275 = vld [vmem:[#allocation5 + $0x6e8] sm:$0xff]
    %v276 = vld [vmem:[#allocation5 + $0x6f0] sm:$0xff]
    %v277 = vld [vmem:[#allocation5 + $0x6f8] sm:$0xff]
    %v278 = vld [vmem:[#allocation5 + $0x700] sm:$0xff]
    %v279 = vld [vmem:[#allocation5 + $0x708] sm:$0xff]
    %v280 = vld [vmem:[#allocation5 + $0x710] sm:$0xff]
    %v281 = vld [vmem:[#allocation5 + $0x718] sm:$0xff]
    %v282 = vld [vmem:[#allocation5 + $0x720] sm:$0xff]
    %v283 = vld [vmem:[#allocation5 + $0x728] sm:$0xff]
    %v284 = vld [vmem:[#allocation5 + $0x730] sm:$0xff]
    %v285 = vld [vmem:[#allocation5 + $0x738] sm:$0xff]
    %v286 = vld [vmem:[#allocation5 + $0x740] sm:$0xff]
    %v287 = vld [vmem:[#allocation5 + $0x748] sm:$0xff]
    %v288 = vld [vmem:[#allocation5 + $0x750] sm:$0xff]
    %v289 = vld [vmem:[#allocation5 + $0x758] sm:$0xff]
    %v290 = vld [vmem:[#allocation5 + $0x760] sm:$0xff]
    %v291 = vld [vmem:[#allocation5 + $0x768] sm:$0xff]
    %v292 = vld [vmem:[#allocation5 + $0x770] sm:$0xff]
    %v293 = vld [vmem:[#allocation5 + $0x778] sm:$0xff]
    %v294 = vld [vmem:[#allocation5 + $0x780] sm:$0xff]
    %v295 = vld [vmem:[#allocation5 + $0x788] sm:$0xff]
    %v296 = vld [vmem:[#allocation5 + $0x790] sm:$0xff]
    %v297 = vld [vmem:[#allocation5 + $0x798] sm:$0xff]
    %v298 = vld [vmem:[#allocation5 + $0x7a0] sm:$0xff]
    %v299 = vld [vmem:[#allocation5 + $0x7a8] sm:$0xff]
    %v300 = vld [vmem:[#allocation5 + $0x7b0] sm:$0xff]
    %v301 = vld [vmem:[#allocation5 + $0x7b8] sm:$0xff]
    %v302 = vld [vmem:[#allocation5 + $0x7c0] sm:$0xff]
    %v303 = vld [vmem:[#allocation5 + $0x7c8] sm:$0xff]
    %v304 = vld [vmem:[#allocation5 + $0x7d0] sm:$0xff]
    %v305 = vld [vmem:[#allocation5 + $0x7d8] sm:$0xff]
    %v306 = vld [vmem:[#allocation5 + $0x7e0] sm:$0xff]
    %v307 = vld [vmem:[#allocation5 + $0x7e8] sm:$0xff]
    %v308 = vld [vmem:[#allocation5 + $0x7f0] sm:$0xff]
    %v309 = vld [vmem:[#allocation5 + $0x7f8] sm:$0xff]
    %v310 = vld [vmem:[#allocation5 + $0x800] sm:$0xff]
    %v311 = vld [vmem:[#allocation5 + $0x808] sm:$0xff]
    %v312 = vld [vmem:[#allocation5 + $0x810] sm:$0xff]
    %v313 = vld [vmem:[#allocation5 + $0x818] sm:$0xff]
    %v314 = vld [vmem:[#allocation5 + $0x820] sm:$0xff]
    %v315 = vld [vmem:[#allocation5 + $0x828] sm:$0xff]
    %v316 = vld [vmem:[#allocation5 + $0x830] sm:$0xff]
    %v317 = vld [vmem:[#allocation5 + $0x838] sm:$0xff]
    %v318 = vld [vmem:[#allocation5 + $0x840] sm:$0xff]
    %v319 = vld [vmem:[#allocation5 + $0x848] sm:$0xff]
    %v320 = vld [vmem:[#allocation5 + $0x850] sm:$0xff]
    %v321 = vld [vmem:[#allocation5 + $0x858] sm:$0xff]
    %v322 = vld [vmem:[#allocation5 + $0x860] sm:$0xff]
    %v323 = vld [vmem:[#allocation5 + $0x868] sm:$0xff]
    %v324 = vld [vmem:[#allocation5 + $0x870] sm:$0xff]
    %v325 = vld [vmem:[#allocation5 + $0x878] sm:$0xff]
    %v326 = vld [vmem:[#allocation5 + $0x880] sm:$0xff]
    %v327 = vld [vmem:[#allocation5 + $0x888] sm:$0xff]
    %v328 = vld [vmem:[#allocation5 + $0x890] sm:$0xff]
    %v329 = vld [vmem:[#allocation5 + $0x898] sm:$0xff]
    %v330 = vld [vmem:[#allocation5 + $0x8a0] sm:$0xff]
    %v331 = vld [vmem:[#allocation5 + $0x8a8] sm:$0xff]
    %v332 = vld [vmem:[#allocation5 + $0x8b0] sm:$0xff]
    %v333 = vld [vmem:[#allocation5 + $0x8b8] sm:$0xff]
    %v334 = vld [vmem:[#allocation5 + $0x8c0] sm:$0xff]
    %v335 = vld [vmem:[#allocation5 + $0x8c8] sm:$0xff]
    %v336 = vld [vmem:[#allocation5 + $0x8d0] sm:$0xff]
    %v337 = vld [vmem:[#allocation5 + $0x8d8] sm:$0xff]
    %v338 = vld [vmem:[#allocation5 + $0x8e0] sm:$0xff]
    %v339 = vld [vmem:[#allocation5 + $0x8e8] sm:$0xff]
    %v340 = vld [vmem:[#allocation5 + $0x8f0] sm:$0xff]
    %v341 = vld [vmem:[#allocation5 + $0x8f8] sm:$0xff]
    %v342 = vld [vmem:[#allocation5 + $0x900] sm:$0xff]
    %v343 = vld [vmem:[#allocation5 + $0x908] sm:$0xff]
    %v344 = vld [vmem:[#allocation5 + $0x910] sm:$0xff]
    %v345 = vld [vmem:[#allocation5 + $0x918] sm:$0xff]
    %v346 = vld [vmem:[#allocation5 + $0x920] sm:$0xff]
    %v347 = vld [vmem:[#allocation5 + $0x928] sm:$0xff]
    %v348 = vld [vmem:[#allocation5 + $0x930] sm:$0xff]
    %v349 = vld [vmem:[#allocation5 + $0x938] sm:$0xff]
    %v350 = vld [vmem:[#allocation5 + $0x940] sm:$0xff]
    %v351 = vld [vmem:[#allocation5 + $0x948] sm:$0xff]
    %v352 = vld [vmem:[#allocation5 + $0x950] sm:$0xff]
    %v353 = vld [vmem:[#allocation5 + $0x958] sm:$0xff]
    %v354 = vld [vmem:[#allocation5 + $0x960] sm:$0xff]
    %v355 = vld [vmem:[#allocation5 + $0x968] sm:$0xff]
    %v356 = vld [vmem:[#allocation5 + $0x970] sm:$0xff]
    %v357 = vld [vmem:[#allocation5 + $0x978] sm:$0xff]
    %v358 = vld [vmem:[#allocation5 + $0x980] sm:$0xff]
    %v359 = vld [vmem:[#allocation5 + $0x988] sm:$0xff]
    %v360 = vld [vmem:[#allocation5 + $0x990] sm:$0xff]
    %v361 = vld [vmem:[#allocation5 + $0x998] sm:$0xff]
    %v362 = vld [vmem:[#allocation5 + $0x9a0] sm:$0xff]
    %v363 = vld [vmem:[#allocation5 + $0x9a8] sm:$0xff]
    %v364 = vld [vmem:[#allocation5 + $0x9b0] sm:$0xff]
    %v365 = vld [vmem:[#allocation5 + $0x9b8] sm:$0xff]
    %v366 = vld [vmem:[#allocation5 + $0x9c0] sm:$0xff]
    %v367 = vld [vmem:[#allocation5 + $0x9c8] sm:$0xff]
    %v368 = vld [vmem:[#allocation5 + $0x9d0] sm:$0xff]
    %v369 = vld [vmem:[#allocation5 + $0x9d8] sm:$0xff]
    %v370 = vld [vmem:[#allocation5 + $0x9e0] sm:$0xff]
    %v371 = vld [vmem:[#allocation5 + $0x9e8] sm:$0xff]
    %v372 = vld [vmem:[#allocation5 + $0x9f0] sm:$0xff]
    %v373 = vld [vmem:[#allocation5 + $0x9f8] sm:$0xff]
    %v374 = vld [vmem:[#allocation5 + $0xa00] sm:$0xff]
    %v375 = vld [vmem:[#allocation5 + $0xa08] sm:$0xff]
    %v376 = vld [vmem:[#allocation5 + $0xa10] sm:$0xff]
    %v377 = vld [vmem:[#allocation5 + $0xa18] sm:$0xff]
    %v378 = vld [vmem:[#allocation5 + $0xa20] sm:$0xff]
    %v379 = vld [vmem:[#allocation5 + $0xa28] sm:$0xff]
    %v380 = vld [vmem:[#allocation5 + $0xa30] sm:$0xff]
    %v381 = vld [vmem:[#allocation5 + $0xa38] sm:$0xff]
    %v382 = vld [vmem:[#allocation5 + $0xa40] sm:$0xff]
    %v383 = vld [vmem:[#allocation5 + $0xa48] sm:$0xff]
    %v384 = vld [vmem:[#allocation5 + $0xa50] sm:$0xff]
    %v385 = vld [vmem:[#allocation5 + $0xa58] sm:$0xff]
    %v386 = vld [vmem:[#allocation5 + $0xa60] sm:$0xff]
    %v387 = vld [vmem:[#allocation5 + $0xa68] sm:$0xff]
    %v388 = vld [vmem:[#allocation5 + $0xa70] sm:$0xff]
    %v389 = vld [vmem:[#allocation5 + $0xa78] sm:$0xff]
    %v390 = vld [vmem:[#allocation5 + $0xa80] sm:$0xff]
    %v391 = vld [vmem:[#allocation5 + $0xa88] sm:$0xff]
    %v392 = vld [vmem:[#allocation5 + $0xa90] sm:$0xff]
    %v393 = vld [vmem:[#allocation5 + $0xa98] sm:$0xff]
    %v394 = vld [vmem:[#allocation5 + $0xaa0] sm:$0xff]
    %v395 = vld [vmem:[#allocation5 + $0xaa8] sm:$0xff]
    %v396 = vld [vmem:[#allocation5 + $0xab0] sm:$0xff]
    %v397 = vld [vmem:[#allocation5 + $0xab8] sm:$0xff]
    %v398 = vld [vmem:[#allocation5 + $0xac0] sm:$0xff]
    %v399 = vld [vmem:[#allocation5 + $0xac8] sm:$0xff]
    %v400 = vld [vmem:[#allocation5 + $0xad0] sm:$0xff]
    %v401 = vld [vmem:[#allocation5 + $0xad8] sm:$0xff]
    %v402 = vld [vmem:[#allocation5 + $0xae0] sm:$0xff]
    %v403 = vld [vmem:[#allocation5 + $0xae8] sm:$0xff]
    %v404 = vld [vmem:[#allocation5 + $0xaf0] sm:$0xff]
    %v405 = vld [vmem:[#allocation5 + $0xaf8] sm:$0xff]
    %v406 = vld [vmem:[#allocation5 + $0xb00] sm:$0xff]
    %v407 = vld [vmem:[#allocation5 + $0xb08] sm:$0xff]
    %v408 = vld [vmem:[#allocation5 + $0xb10] sm:$0xff]
    %v409 = vld [vmem:[#allocation5 + $0xb18] sm:$0xff]
    %v410 = vld [vmem:[#allocation5 + $0xb20] sm:$0xff]
    %v411 = vld [vmem:[#allocation5 + $0xb28] sm:$0xff]
    %v412 = vld [vmem:[#allocation5 + $0xb30] sm:$0xff]
    %v413 = vld [vmem:[#allocation5 + $0xb38] sm:$0xff]
    %v414 = vld [vmem:[#allocation5 + $0xb40] sm:$0xff]
    %v415 = vld [vmem:[#allocation5 + $0xb48] sm:$0xff]
    %v416 = vld [vmem:[#allocation5 + $0xb50] sm:$0xff]
    %v417 = vld [vmem:[#allocation5 + $0xb58] sm:$0xff]
    %v418 = vld [vmem:[#allocation5 + $0xb60] sm:$0xff]
    %v419 = vld [vmem:[#allocation5 + $0xb68] sm:$0xff]
    %v420 = vld [vmem:[#allocation5 + $0xb70] sm:$0xff]
    %v421 = vld [vmem:[#allocation5 + $0xb78] sm:$0xff]
    %v422 = vld [vmem:[#allocation5 + $0xb80] sm:$0xff]
    %v423 = vld [vmem:[#allocation5 + $0xb88] sm:$0xff]
    %v424 = vld [vmem:[#allocation5 + $0xb90] sm:$0xff]
    %v425 = vld [vmem:[#allocation5 + $0xb98] sm:$0xff]
    %v426 = vld [vmem:[#allocation5 + $0xba0] sm:$0xff]
    %v427 = vld [vmem:[#allocation5 + $0xba8] sm:$0xff]
    %v428 = vld [vmem:[#allocation5 + $0xbb0] sm:$0xff]
    %v429 = vld [vmem:[#allocation5 + $0xbb8] sm:$0xff]
    %v430 = vld [vmem:[#allocation5 + $0xbc0] sm:$0xff]
    %v431 = vld [vmem:[#allocation5 + $0xbc8] sm:$0xff]
    %v432 = vld [vmem:[#allocation5 + $0xbd0] sm:$0xff]
    %v433 = vld [vmem:[#allocation5 + $0xbd8] sm:$0xff]
    %v434 = vld [vmem:[#allocation5 + $0xbe0] sm:$0xff]
    %v435 = vld [vmem:[#allocation5 + $0xbe8] sm:$0xff]
    %v436 = vld [vmem:[#allocation5 + $0xbf0] sm:$0xff]
    %v437 = vld [vmem:[#allocation5 + $0xbf8] sm:$0xff]
    %v438 = vld [vmem:[#allocation5 + $0xc00] sm:$0xff]
    %v439 = vld [vmem:[#allocation5 + $0xc08] sm:$0xff]
    %v440 = vld [vmem:[#allocation5 + $0xc10] sm:$0xff]
    %v441 = vld [vmem:[#allocation5 + $0xc18] sm:$0xff]
    %v442 = vld [vmem:[#allocation5 + $0xc20] sm:$0xff]
    %v443 = vld [vmem:[#allocation5 + $0xc28] sm:$0xff]
    %v444 = vld [vmem:[#allocation5 + $0xc30] sm:$0xff]
    %v445 = vld [vmem:[#allocation5 + $0xc38] sm:$0xff]
    %v446 = vld [vmem:[#allocation5 + $0xc40] sm:$0xff]
    %v447 = vld [vmem:[#allocation5 + $0xc48] sm:$0xff]
    %v448 = vld [vmem:[#allocation5 + $0xc50] sm:$0xff]
    %v449 = vld [vmem:[#allocation5 + $0xc58] sm:$0xff]
    %v450 = vld [vmem:[#allocation5 + $0xc60] sm:$0xff]
    %v451 = vld [vmem:[#allocation5 + $0xc68] sm:$0xff]
    %v452 = vld [vmem:[#allocation5 + $0xc70] sm:$0xff]
    %v453 = vld [vmem:[#allocation5 + $0xc78] sm:$0xff]
    %v454 = vld [vmem:[#allocation5 + $0xc80] sm:$0xff]
    %v455 = vld [vmem:[#allocation5 + $0xc88] sm:$0xff]
    %v456 = vld [vmem:[#allocation5 + $0xc90] sm:$0xff]
    %v457 = vld [vmem:[#allocation5 + $0xc98] sm:$0xff]
    %v458 = vld [vmem:[#allocation5 + $0xca0] sm:$0xff]
    %v459 = vld [vmem:[#allocation5 + $0xca8] sm:$0xff]
    %v460 = vld [vmem:[#allocation5 + $0xcb0] sm:$0xff]
    %v461 = vld [vmem:[#allocation5 + $0xcb8] sm:$0xff]
    %v462 = vld [vmem:[#allocation5 + $0xcc0] sm:$0xff]
    %v463 = vld [vmem:[#allocation5 + $0xcc8] sm:$0xff]
    %v464 = vld [vmem:[#allocation5 + $0xcd0] sm:$0xff]
    %v465 = vld [vmem:[#allocation5 + $0xcd8] sm:$0xff]
    %v466 = vld [vmem:[#allocation5 + $0xce0] sm:$0xff]
    %v467 = vld [vmem:[#allocation5 + $0xce8] sm:$0xff]
    %v468 = vld [vmem:[#allocation5 + $0xcf0] sm:$0xff]
    %v469 = vld [vmem:[#allocation5 + $0xcf8] sm:$0xff]
    %v470 = vld [vmem:[#allocation5 + $0xd00] sm:$0xff]
    %v471 = vld [vmem:[#allocation5 + $0xd08] sm:$0xff]
    %v472 = vld [vmem:[#allocation5 + $0xd10] sm:$0xff]
    %v473 = vld [vmem:[#allocation5 + $0xd18] sm:$0xff]
    %v474 = vld [vmem:[#allocation5 + $0xd20] sm:$0xff]
    %v475 = vld [vmem:[#allocation5 + $0xd28] sm:$0xff]
    %v476 = vld [vmem:[#allocation5 + $0xd30] sm:$0xff]
    %v477 = vld [vmem:[#allocation5 + $0xd38] sm:$0xff]
    %v478 = vld [vmem:[#allocation5 + $0xd40] sm:$0xff]
    %v479 = vld [vmem:[#allocation5 + $0xd48] sm:$0xff]
    %v480 = vld [vmem:[#allocation5 + $0xd50] sm:$0xff]
    %v481 = vld [vmem:[#allocation5 + $0xd58] sm:$0xff]
    %v482 = vld [vmem:[#allocation5 + $0xd60] sm:$0xff]
    %v483 = vld [vmem:[#allocation5 + $0xd68] sm:$0xff]
    %v484 = vld [vmem:[#allocation5 + $0xd70] sm:$0xff]
    %v485 = vld [vmem:[#allocation5 + $0xd78] sm:$0xff]
    %v486 = vld [vmem:[#allocation5 + $0xd80] sm:$0xff]
    %v487 = vld [vmem:[#allocation5 + $0xd88] sm:$0xff]
    %v488 = vld [vmem:[#allocation5 + $0xd90] sm:$0xff]
    %v489 = vld [vmem:[#allocation5 + $0xd98] sm:$0xff]
    %v490 = vld [vmem:[#allocation5 + $0xda0] sm:$0xff]
    %v491 = vld [vmem:[#allocation5 + $0xda8] sm:$0xff]
    %v492 = vld [vmem:[#allocation5 + $0xdb0] sm:$0xff]
    %v493 = vld [vmem:[#allocation5 + $0xdb8] sm:$0xff]
    %v494 = vld [vmem:[#allocation5 + $0xdc0] sm:$0xff]
    %v495 = vld [vmem:[#allocation5 + $0xdc8] sm:$0xff]
    %v496 = vld [vmem:[#allocation5 + $0xdd0] sm:$0xff]
    %v497 = vld [vmem:[#allocation5 + $0xdd8] sm:$0xff]
    %v498 = vld [vmem:[#allocation5 + $0xde0] sm:$0xff]
    %v499 = vld [vmem:[#allocation5 + $0xde8] sm:$0xff]
    %v500 = vld [vmem:[#allocation5 + $0xdf0] sm:$0xff]
    %v501 = vld [vmem:[#allocation5 + $0xdf8] sm:$0xff]
    %v502 = vld [vmem:[#allocation5 + $0xe00] sm:$0xff]
    %v503 = vld [vmem:[#allocation5 + $0xe08] sm:$0xff]
    %v504 = vld [vmem:[#allocation5 + $0xe10] sm:$0xff]
    %v505 = vld [vmem:[#allocation5 + $0xe18] sm:$0xff]
    %v506 = vld [vmem:[#allocation5 + $0xe20] sm:$0xff]
    %v507 = vld [vmem:[#allocation5 + $0xe28] sm:$0xff]
    %v508 = vld [vmem:[#allocation5 + $0xe30] sm:$0xff]
    %v509 = vld [vmem:[#allocation5 + $0xe38] sm:$0xff]
    %v510 = vld [vmem:[#allocation5 + $0xe40] sm:$0xff]
    %v511 = vld [vmem:[#allocation5 + $0xe48] sm:$0xff]
    %v512 = vld [vmem:[#allocation5 + $0xe50] sm:$0xff]
    %v513 = vld [vmem:[#allocation5 + $0xe58] sm:$0xff]
    %v514 = vld [vmem:[#allocation5 + $0xe60] sm:$0xff]
    %v515 = vld [vmem:[#allocation5 + $0xe68] sm:$0xff]
    %v516 = vld [vmem:[#allocation5 + $0xe70] sm:$0xff]
    %v517 = vld [vmem:[#allocation5 + $0xe78] sm:$0xff]
    %v518 = vld [vmem:[#allocation5 + $0xe80] sm:$0xff]
    %v519 = vld [vmem:[#allocation5 + $0xe88] sm:$0xff]
    %v520 = vld [vmem:[#allocation5 + $0xe90] sm:$0xff]
    %v521 = vld [vmem:[#allocation5 + $0xe98] sm:$0xff]
    %v522 = vld [vmem:[#allocation5 + $0xea0] sm:$0xff]
    %v523 = vld [vmem:[#allocation5 + $0xea8] sm:$0xff]
    %v524 = vld [vmem:[#allocation5 + $0xeb0] sm:$0xff]
    %v525 = vld [vmem:[#allocation5 + $0xeb8] sm:$0xff]
    %v526 = vld [vmem:[#allocation5 + $0xec0] sm:$0xff]
    %v527 = vld [vmem:[#allocation5 + $0xec8] sm:$0xff]
    %v528 = vld [vmem:[#allocation5 + $0xed0] sm:$0xff]
    %v529 = vld [vmem:[#allocation5 + $0xed8] sm:$0xff]
    %v530 = vld [vmem:[#allocation5 + $0xee0] sm:$0xff]
    %v531 = vld [vmem:[#allocation5 + $0xee8] sm:$0xff]
    %v532 = vld [vmem:[#allocation5 + $0xef0] sm:$0xff]
    %v533 = vld [vmem:[#allocation5 + $0xef8] sm:$0xff]
    %v534 = vld [vmem:[#allocation5 + $0xf00] sm:$0xff]
    %v535 = vld [vmem:[#allocation5 + $0xf08] sm:$0xff]
    %v536 = vld [vmem:[#allocation5 + $0xf10] sm:$0xff]
    %v537 = vld [vmem:[#allocation5 + $0xf18] sm:$0xff]
    %v538 = vld [vmem:[#allocation5 + $0xf20] sm:$0xff]
    %v539 = vld [vmem:[#allocation5 + $0xf28] sm:$0xff]
    %v540 = vld [vmem:[#allocation5 + $0xf30] sm:$0xff]
    %v541 = vld [vmem:[#allocation5 + $0xf38] sm:$0xff]
    %v542 = vld [vmem:[#allocation5 + $0xf40] sm:$0xff]
    %v543 = vld [vmem:[#allocation5 + $0xf48] sm:$0xff]
    %v544 = vld [vmem:[#allocation5 + $0xf50] sm:$0xff]
    %v545 = vld [vmem:[#allocation5 + $0xf58] sm:$0xff]
    %v546 = vld [vmem:[#allocation5 + $0xf60] sm:$0xff]
    %v547 = vld [vmem:[#allocation5 + $0xf68] sm:$0xff]
    %v548 = vld [vmem:[#allocation5 + $0xf70] sm:$0xff]
    %v549 = vld [vmem:[#allocation5 + $0xf78] sm:$0xff]
    %v550 = vld [vmem:[#allocation5 + $0xf80] sm:$0xff]
    %v551 = vld [vmem:[#allocation5 + $0xf88] sm:$0xff]
    %v552 = vld [vmem:[#allocation5 + $0xf90] sm:$0xff]
    %v553 = vld [vmem:[#allocation5 + $0xf98] sm:$0xff]
    %v554 = vld [vmem:[#allocation5 + $0xfa0] sm:$0xff]
    %v555 = vld [vmem:[#allocation5 + $0xfa8] sm:$0xff]
    %v556 = vld [vmem:[#allocation5 + $0xfb0] sm:$0xff]
    %v557 = vld [vmem:[#allocation5 + $0xfb8] sm:$0xff]
    %v558 = vld [vmem:[#allocation5 + $0xfc0] sm:$0xff]
    %v559 = vld [vmem:[#allocation5 + $0xfc8] sm:$0xff]
    %v560 = vld [vmem:[#allocation5 + $0xfd0] sm:$0xff]
    %v561 = vld [vmem:[#allocation5 + $0xfd8] sm:$0xff]
    %v562 = vld [vmem:[#allocation5 + $0xfe0] sm:$0xff]
    %v563 = vld [vmem:[#allocation5 + $0xfe8] sm:$0xff]
    %v564 = vld [vmem:[#allocation5 + $0xff0] sm:$0xff]
    %v565 = vld [vmem:[#allocation5 + $0xff8] sm:$0xff]
    %v566 = vld [vmem:[#allocation5 + $0x1000] sm:$0xff]
    %v567 = vld [vmem:[#allocation5 + $0x1008] sm:$0xff]
    %v568 = vld [vmem:[#allocation5 + $0x1010] sm:$0xff]
    %v569 = vld [vmem:[#allocation5 + $0x1018] sm:$0xff]
    %v570 = vld [vmem:[#allocation5 + $0x1020] sm:$0xff]
    %v571 = vld [vmem:[#allocation5 + $0x1028] sm:$0xff]
    %v572 = vld [vmem:[#allocation5 + $0x1030] sm:$0xff]
    %v573 = vld [vmem:[#allocation5 + $0x1038] sm:$0xff]
    %v574 = vld [vmem:[#allocation5 + $0x1040] sm:$0xff]
    %v575 = vld [vmem:[#allocation5 + $0x1048] sm:$0xff]
    %v576 = vld [vmem:[#allocation5 + $0x1050] sm:$0xff]
    %v577 = vld [vmem:[#allocation5 + $0x1058] sm:$0xff]
    %v578 = vld [vmem:[#allocation5 + $0x1060] sm:$0xff]
    %v579 = vld [vmem:[#allocation5 + $0x1068] sm:$0xff]
    %v580 = vld [vmem:[#allocation5 + $0x1070] sm:$0xff]
    %v581 = vld [vmem:[#allocation5 + $0x1078] sm:$0xff]
    %v582 = vld [vmem:[#allocation5 + $0x1080] sm:$0xff]
    %v583 = vld [vmem:[#allocation5 + $0x1088] sm:$0xff]
    %v584 = vld [vmem:[#allocation5 + $0x1090] sm:$0xff]
    %v585 = vld [vmem:[#allocation5 + $0x1098] sm:$0xff]
    %v586 = vld [vmem:[#allocation5 + $0x10a0] sm:$0xff]
    %v587 = vld [vmem:[#allocation5 + $0x10a8] sm:$0xff]
    %v588 = vld [vmem:[#allocation5 + $0x10b0] sm:$0xff]
    %v589 = vld [vmem:[#allocation5 + $0x10b8] sm:$0xff]
    %v590 = vld [vmem:[#allocation5 + $0x10c0] sm:$0xff]
    %v591 = vld [vmem:[#allocation5 + $0x10c8] sm:$0xff]
    %v592 = vld [vmem:[#allocation5 + $0x10d0] sm:$0xff]
    %v593 = vld [vmem:[#allocation5 + $0x10d8] sm:$0xff]
    %v594 = vld [vmem:[#allocation5 + $0x10e0] sm:$0xff]
    %v595 = vld [vmem:[#allocation5 + $0x10e8] sm:$0xff]
    %v596 = vld [vmem:[#allocation5 + $0x10f0] sm:$0xff]
    %v597 = vld [vmem:[#allocation5 + $0x10f8] sm:$0xff]
    %v598 = vld [vmem:[#allocation5 + $0x1100] sm:$0xff]
    %v599 = vld [vmem:[#allocation5 + $0x1108] sm:$0xff]
    %v600 = vld [vmem:[#allocation5 + $0x1110] sm:$0xff]
    %v601 = vld [vmem:[#allocation5 + $0x1118] sm:$0xff]
    %v602 = vld [vmem:[#allocation5 + $0x1120] sm:$0xff]
    %v603 = vld [vmem:[#allocation5 + $0x1128] sm:$0xff]
    %v604 = vld [vmem:[#allocation5 + $0x1130] sm:$0xff]
    %v605 = vld [vmem:[#allocation5 + $0x1138] sm:$0xff]
    %v606 = vld [vmem:[#allocation5 + $0x1140] sm:$0xff]
    %v607 = vld [vmem:[#allocation5 + $0x1148] sm:$0xff]
    %v608 = vld [vmem:[#allocation5 + $0x1150] sm:$0xff]
    %v609 = vld [vmem:[#allocation5 + $0x1158] sm:$0xff]
    %v610 = vld [vmem:[#allocation5 + $0x1160] sm:$0xff]
    %v611 = vld [vmem:[#allocation5 + $0x1168] sm:$0xff]
    %v612 = vld [vmem:[#allocation5 + $0x1170] sm:$0xff]
    %v613 = vld [vmem:[#allocation5 + $0x1178] sm:$0xff]
    %v614 = vld [vmem:[#allocation5 + $0x1180] sm:$0xff]
    %v615 = vld [vmem:[#allocation5 + $0x1188] sm:$0xff]
    %v616 = vld [vmem:[#allocation5 + $0x1190] sm:$0xff]
    %v617 = vld [vmem:[#allocation5 + $0x1198] sm:$0xff]
    %v618 = vld [vmem:[#allocation5 + $0x11a0] sm:$0xff]
    %v619 = vld [vmem:[#allocation5 + $0x11a8] sm:$0xff]
    %v620 = vld [vmem:[#allocation5 + $0x11b0] sm:$0xff]
    %v621 = vld [vmem:[#allocation5 + $0x11b8] sm:$0xff]
    %v622 = vld [vmem:[#allocation5 + $0x11c0] sm:$0xff]
    %v623 = vld [vmem:[#allocation5 + $0x11c8] sm:$0xff]
    %v624 = vld [vmem:[#allocation5 + $0x11d0] sm:$0xff]
    %v625 = vld [vmem:[#allocation5 + $0x11d8] sm:$0xff]
    %v626 = vld [vmem:[#allocation5 + $0x11e0] sm:$0xff]
    %v627 = vld [vmem:[#allocation5 + $0x11e8] sm:$0xff]
    %v628 = vld [vmem:[#allocation5 + $0x11f0] sm:$0xff]
    %v629 = vld [vmem:[#allocation5 + $0x11f8] sm:$0xff]
    %v630 = vld [vmem:[#allocation5 + $0x1200] sm:$0xff]
    %v631 = vld [vmem:[#allocation5 + $0x1208] sm:$0xff]
    %v632 = vld [vmem:[#allocation5 + $0x1210] sm:$0xff]
    %v633 = vld [vmem:[#allocation5 + $0x1218] sm:$0xff]
    %v634 = vld [vmem:[#allocation5 + $0x1220] sm:$0xff]
    %v635 = vld [vmem:[#allocation5 + $0x1228] sm:$0xff]
    %v636 = vld [vmem:[#allocation5 + $0x1230] sm:$0xff]
    %v637 = vld [vmem:[#allocation5 + $0x1238] sm:$0xff]
    %v638 = vld [vmem:[#allocation5 + $0x1240] sm:$0xff]
    %v639 = vld [vmem:[#allocation5 + $0x1248] sm:$0xff]
    %v640 = vld [vmem:[#allocation5 + $0x1250] sm:$0xff]
    %v641 = vld [vmem:[#allocation5 + $0x1258] sm:$0xff]
    %v642 = vld [vmem:[#allocation5 + $0x1260] sm:$0xff]
    %v643 = vld [vmem:[#allocation5 + $0x1268] sm:$0xff]
    %v644 = vld [vmem:[#allocation5 + $0x1270] sm:$0xff]
    %v645 = vld [vmem:[#allocation5 + $0x1278] sm:$0xff]
    %v646 = vld [vmem:[#allocation5 + $0x1280] sm:$0xff]
    %v647 = vld [vmem:[#allocation5 + $0x1288] sm:$0xff]
    %v648 = vld [vmem:[#allocation5 + $0x1290] sm:$0xff]
    %v649 = vld [vmem:[#allocation5 + $0x1298] sm:$0xff]
    %v650 = vld [vmem:[#allocation5 + $0x12a0] sm:$0xff]
    %v651 = vld [vmem:[#allocation5 + $0x12a8] sm:$0xff]
    %v652 = vld [vmem:[#allocation5 + $0x12b0] sm:$0xff]
    %v653 = vld [vmem:[#allocation5 + $0x12b8] sm:$0xff]
    %v654 = vld [vmem:[#allocation7] sm:$0xff]
    %v655 = vld [vmem:[#allocation7 + $0x8] sm:$0xff]
    %v656 = vld [vmem:[#allocation7 + $0x10] sm:$0xff]
    %v657 = vld [vmem:[#allocation7 + $0x18] sm:$0x3f]
    %v662 = vlaneseq
    %v663 = vshrl.u32 %v662, 7
    %v664 = vsub.s32 0, %v663
    %v665 = vrot.slane %v654, %v664
    %v666 = vlaneseq
    %v667 = vshrl.u32 %v666, 7
    %v668 = vsub.s32 1, %v667
    %v669 = vrot.slane %v654, %v668
    %v670 = vlaneseq
    %v671 = vshrl.u32 %v670, 7
    %v672 = vsub.s32 2, %v671
    %v673 = vrot.slane %v654, %v672
    %v674 = vlaneseq
    %v675 = vshrl.u32 %v674, 7
    %v676 = vsub.s32 3, %v675
    %v677 = vrot.slane %v654, %v676
    %v678 = vlaneseq
    %v679 = vshrl.u32 %v678, 7
    %v680 = vsub.s32 4, %v679
    %v681 = vrot.slane %v654, %v680
    %v682 = vlaneseq
    %v683 = vshrl.u32 %v682, 7
    %v684 = vsub.s32 5, %v683
    %v685 = vrot.slane %v654, %v684
    %v686 = vlaneseq
    %v687 = vshrl.u32 %v686, 7
    %v688 = vsub.s32 6, %v687
    %v689 = vrot.slane %v654, %v688
    %v690 = vlaneseq
    %v691 = vshrl.u32 %v690, 7
    %v692 = vsub.s32 7, %v691
    %v693 = vrot.slane %v654, %v692
    %v694 = vlaneseq
    %v695 = vshrl.u32 %v694, 7
    %v696 = vsub.s32 0, %v695
    %v697 = vrot.slane %v655, %v696
    %v698 = vlaneseq
    %v699 = vshrl.u32 %v698, 7
    %v700 = vsub.s32 1, %v699
    %v701 = vrot.slane %v655, %v700
    %v702 = vlaneseq
    %v703 = vshrl.u32 %v702, 7
    %v704 = vsub.s32 2, %v703
    %v705 = vrot.slane %v655, %v704
    %v706 = vlaneseq
    %v707 = vshrl.u32 %v706, 7
    %v708 = vsub.s32 3, %v707
    %v709 = vrot.slane %v655, %v708
    %v710 = vlaneseq
    %v711 = vshrl.u32 %v710, 7
    %v712 = vsub.s32 4, %v711
    %v713 = vrot.slane %v655, %v712
    %v714 = vlaneseq
    %v715 = vshrl.u32 %v714, 7
    %v716 = vsub.s32 5, %v715
    %v717 = vrot.slane %v655, %v716
    %v718 = vlaneseq
    %v719 = vshrl.u32 %v718, 7
    %v720 = vsub.s32 6, %v719
    %v721 = vrot.slane %v655, %v720
    %v722 = vlaneseq
    %v723 = vshrl.u32 %v722, 7
    %v724 = vsub.s32 7, %v723
    %v725 = vrot.slane %v655, %v724
    %v726 = vlaneseq
    %v727 = vshrl.u32 %v726, 7
    %v728 = vsub.s32 0, %v727
    %v729 = vrot.slane %v656, %v728
    %v730 = vlaneseq
    %v731 = vshrl.u32 %v730, 7
    %v732 = vsub.s32 1, %v731
    %v733 = vrot.slane %v656, %v732
    %v734 = vlaneseq
    %v735 = vshrl.u32 %v734, 7
    %v736 = vsub.s32 2, %v735
    %v737 = vrot.slane %v656, %v736
    %v738 = vlaneseq
    %v739 = vshrl.u32 %v738, 7
    %v740 = vsub.s32 3, %v739
    %v741 = vrot.slane %v656, %v740
    %v742 = vlaneseq
    %v743 = vshrl.u32 %v742, 7
    %v744 = vsub.s32 4, %v743
    %v745 = vrot.slane %v656, %v744
    %v746 = vlaneseq
    %v747 = vshrl.u32 %v746, 7
    %v748 = vsub.s32 5, %v747
    %v749 = vrot.slane %v656, %v748
    %v750 = vlaneseq
    %v751 = vshrl.u32 %v750, 7
    %v752 = vsub.s32 6, %v751
    %v753 = vrot.slane %v656, %v752
    %v754 = vlaneseq
    %v755 = vshrl.u32 %v754, 7
    %v756 = vsub.s32 7, %v755
    %v757 = vrot.slane %v656, %v756
    %v758 = vlaneseq
    %v759 = vshrl.u32 %v758, 7
    %v760 = vsub.s32 0, %v759
    %v761 = vrot.slane %v657, %v760
    %v762 = vlaneseq
    %v763 = vshrl.u32 %v762, 7
    %v764 = vsub.s32 1, %v763
    %v765 = vrot.slane %v657, %v764
    %v766 = vlaneseq
    %v767 = vshrl.u32 %v766, 7
    %v768 = vsub.s32 2, %v767
    %v769 = vrot.slane %v657, %v768
    %v770 = vlaneseq
    %v771 = vshrl.u32 %v770, 7
    %v772 = vsub.s32 3, %v771
    %v773 = vrot.slane %v657, %v772
    %v774 = vlaneseq
    %v775 = vshrl.u32 %v774, 7
    %v776 = vsub.s32 4, %v775
    %v777 = vrot.slane %v657, %v776
    %v778 = vlaneseq
    %v779 = vshrl.u32 %v778, 7
    %v780 = vsub.s32 5, %v779
    %v781 = vrot.slane %v657, %v780
    %vm812 = vcmask 261120
    %v814 = vsel %vm812, %v53, 0
    %816 = vmatprep.subr.mxu0 %v55
    %817 = vmatpush1.msra.mxu0 %v54
    %818 = vmatprep.subr.mxu0 %v85
    %819 = vmatpush1.msra.mxu0 %v84
    %820 = vmatprep.subr.mxu0 %v115
    %821 = vmatpush1.msra.mxu0 %v114
    %822 = vmatprep.subr.mxu0 %v145
    %823 = vmatpush1.msra.mxu0 %v144
    %824 = vmatprep.subr.mxu0 %v175
    %825 = vmatpush1.msra.mxu0 %v174
    %826 = vmatprep.subr.mxu0 %v205
    %827 = vmatpush1.msra.mxu0 %v204
    %828 = vmatprep.subr.mxu0 %v235
    %829 = vmatpush1.msra.mxu0 %v234
    %830 = vmatprep.subr.mxu0 %v265
    %831 = vmatpush1.msra.mxu0 %v264
    %832 = vmatprep.subr.mxu0 %v295
    %833 = vmatpush1.msra.mxu0 %v294
    %834 = vmatprep.subr.mxu0 %v325
    %835 = vmatpush1.msra.mxu0 %v324
    %836 = vmatprep.subr.mxu0 %v355
    %837 = vmatpush1.msra.mxu0 %v354
    %838 = vmatprep.subr.mxu0 %v385
    %839 = vmatpush1.msra.mxu0 %v384
    %840 = vmatprep.subr.mxu0 %v415
    %841 = vmatpush1.msra.mxu0 %v414
    %842 = vmatprep.subr.mxu0 %v445
    %843 = vmatpush1.msra.mxu0 %v444
    %844 = vmatprep.subr.mxu0 %v475
    %845 = vmatpush1.msra.mxu0 %v474
    %846 = vmatprep.subr.mxu0 %v505
    %847 = vmatpush1.msra.mxu0 %v504
    %848 = vmatprep.subr.mxu0 %v535
    %849 = vmatpush1.msra.mxu0 %v534
    %850 = vmatprep.subr.mxu0 %v565
    %851 = vmatpush1.msra.mxu0 %v564
    %852 = vmatprep.subr.mxu0 %v595
    %853 = vmatpush1.msra.mxu0 %v594
    %854 = vmatprep.subr.mxu0 %v625
    %855 = vmatpush1.msra.mxu0 %v624
    %856 = vmatprep.subr.mxu0 0.0
    %857 = vmatpush1.msra.mxu0 0.0
    %858 = vmatprep.subr.mxu0 0.0
    %859 = vmatpush1.msra.mxu0 0.0
    %860 = vmatprep.subr.mxu0 0.0
    %861 = vmatpush1.msra.mxu0 0.0
    %862 = vmatprep.subr.mxu0 0.0
    %863 = vmatpush1.msra.mxu0 0.0
    %864 = vmatprep.subr.mxu0 0.0
    %865 = vmatpush1.msra.mxu0 0.0
    %866 = vmatprep.subr.mxu0 0.0
    %867 = vmatpush1.msra.mxu0 0.0
    %868 = vmatprep.subr.mxu0 0.0
    %869 = vmatpush1.msra.mxu0 0.0
    %870 = vmatprep.subr.mxu0 0.0
    %871 = vmatpush1.msra.mxu0 0.0
    %872 = vmatprep.subr.mxu0 0.0
    %873 = vmatpush1.msra.mxu0 0.0
    %874 = vmatprep.subr.mxu0 0.0
    %875 = vmatpush1.msra.mxu0 0.0
    %876 = vmatprep.subr.mxu0 0.0
    %877 = vmatpush1.msra.mxu0 0.0
    %878 = vmatprep.subr.mxu0 0.0
    %879 = vmatpush1.msra.mxu0 0.0
    %880 = vmatprep.mubr.f32.mxu0 %v814
    %881 = vmatmul.mubr.f32.gmra.mrb[0].mxu0 %v52
    %v882 = vpop.f32.mrb[0].mxu0
    %v883 = vadd.f32 %v665, %v882
    %v884 = vpop.f32.mrb[0].mxu0
    %v885 = vadd.f32 %v669, %v884
    %886 = vdwg.mxu0
    %887 = vmatprep.subr.mxu0 %v57
    %888 = vmatpush1.msra.mxu0 %v56
    %889 = vmatprep.subr.mxu0 %v87
    %890 = vmatpush1.msra.mxu0 %v86
    %891 = vmatprep.subr.mxu0 %v117
    %892 = vmatpush1.msra.mxu0 %v116
    %893 = vmatprep.subr.mxu0 %v147
    %894 = vmatpush1.msra.mxu0 %v146
    %895 = vmatprep.subr.mxu0 %v177
    %896 = vmatpush1.msra.mxu0 %v176
    %897 = vmatprep.subr.mxu0 %v207
    %898 = vmatpush1.msra.mxu0 %v206
    %899 = vmatprep.subr.mxu0 %v237
    %900 = vmatpush1.msra.mxu0 %v236
    %901 = vmatprep.subr.mxu0 %v267
    %902 = vmatpush1.msra.mxu0 %v266
    %903 = vmatprep.subr.mxu0 %v297
    %904 = vmatpush1.msra.mxu0 %v296
    %905 = vmatprep.subr.mxu0 %v327
    %906 = vmatpush1.msra.mxu0 %v326
    %907 = vmatprep.subr.mxu0 %v357
    %908 = vmatpush1.msra.mxu0 %v356
    %909 = vmatprep.subr.mxu0 %v387
    %910 = vmatpush1.msra.mxu0 %v386
    %911 = vmatprep.subr.mxu0 %v417
    %912 = vmatpush1.msra.mxu0 %v416
    %913 = vmatprep.subr.mxu0 %v447
    %914 = vmatpush1.msra.mxu0 %v446
    %915 = vmatprep.subr.mxu0 %v477
    %916 = vmatpush1.msra.mxu0 %v476
    %917 = vmatprep.subr.mxu0 %v507
    %918 = vmatpush1.msra.mxu0 %v506
    %919 = vmatprep.subr.mxu0 %v537
    %920 = vmatpush1.msra.mxu0 %v536
    %921 = vmatprep.subr.mxu0 %v567
    %922 = vmatpush1.msra.mxu0 %v566
    %923 = vmatprep.subr.mxu0 %v597
    %924 = vmatpush1.msra.mxu0 %v596
    %925 = vmatprep.subr.mxu0 %v627
    %926 = vmatpush1.msra.mxu0 %v626
    %927 = vmatprep.subr.mxu0 0.0
    %928 = vmatpush1.msra.mxu0 0.0
    %929 = vmatprep.subr.mxu0 0.0
    %930 = vmatpush1.msra.mxu0 0.0
    %931 = vmatprep.subr.mxu0 0.0
    %932 = vmatpush1.msra.mxu0 0.0
    %933 = vmatprep.subr.mxu0 0.0
    %934 = vmatpush1.msra.mxu0 0.0
    %935 = vmatprep.subr.mxu0 0.0
    %936 = vmatpush1.msra.mxu0 0.0
    %937 = vmatprep.subr.mxu0 0.0
    %938 = vmatpush1.msra.mxu0 0.0
    %939 = vmatprep.subr.mxu0 0.0
    %940 = vmatpush1.msra.mxu0 0.0
    %941 = vmatprep.subr.mxu0 0.0
    %942 = vmatpush1.msra.mxu0 0.0
    %943 = vmatprep.subr.mxu0 0.0
    %944 = vmatpush1.msra.mxu0 0.0
    %945 = vmatprep.subr.mxu0 0.0
    %946 = vmatpush1.msra.mxu0 0.0
    %947 = vmatprep.subr.mxu0 0.0
    %948 = vmatpush1.msra.mxu0 0.0
    %949 = vmatprep.subr.mxu0 0.0
    %950 = vmatpush1.msra.mxu0 0.0
    %951 = vmatprep.mubr.f32.mxu0 %v814
    %952 = vmatmul.mubr.f32.gmra.mrb[0].mxu0 %v52
    %v953 = vpop.f32.mrb[0].mxu0
    %v954 = vadd.f32 %v673, %v953
    %v955 = vpop.f32.mrb[0].mxu0
    %v956 = vadd.f32 %v677, %v955
    %957 = vdwg.mxu0
    %958 = vmatprep.subr.mxu0 %v59
    %959 = vmatpush1.msra.mxu0 %v58
    %960 = vmatprep.subr.mxu0 %v89
    %961 = vmatpush1.msra.mxu0 %v88
    %962 = vmatprep.subr.mxu0 %v119
    %963 = vmatpush1.msra.mxu0 %v118
    %964 = vmatprep.subr.mxu0 %v149
    %965 = vmatpush1.msra.mxu0 %v148
    %966 = vmatprep.subr.mxu0 %v179
    %967 = vmatpush1.msra.mxu0 %v178
    %968 = vmatprep.subr.mxu0 %v209
    %969 = vmatpush1.msra.mxu0 %v208
    %970 = vmatprep.subr.mxu0 %v239
    %971 = vmatpush1.msra.mxu0 %v238
    %972 = vmatprep.subr.mxu0 %v269
    %973 = vmatpush1.msra.mxu0 %v268
    %974 = vmatprep.subr.mxu0 %v299
    %975 = vmatpush1.msra.mxu0 %v298
    %976 = vmatprep.subr.mxu0 %v329
    %977 = vmatpush1.msra.mxu0 %v328
    %978 = vmatprep.subr.mxu0 %v359
    %979 = vmatpush1.msra.mxu0 %v358
    %980 = vmatprep.subr.mxu0 %v389
    %981 = vmatpush1.msra.mxu0 %v388
    %982 = vmatprep.subr.mxu0 %v419
    %983 = vmatpush1.msra.mxu0 %v418
    %984 = vmatprep.subr.mxu0 %v449
    %985 = vmatpush1.msra.mxu0 %v448
    %986 = vmatprep.subr.mxu0 %v479
    %987 = vmatpush1.msra.mxu0 %v478
    %988 = vmatprep.subr.mxu0 %v509
    %989 = vmatpush1.msra.mxu0 %v508
    %990 = vmatprep.subr.mxu0 %v539
    %991 = vmatpush1.msra.mxu0 %v538
    %992 = vmatprep.subr.mxu0 %v569
    %993 = vmatpush1.msra.mxu0 %v568
    %994 = vmatprep.subr.mxu0 %v599
    %995 = vmatpush1.msra.mxu0 %v598
    %996 = vmatprep.subr.mxu0 %v629
    %997 = vmatpush1.msra.mxu0 %v628
    %998 = vmatprep.subr.mxu0 0.0
    %999 = vmatpush1.msra.mxu0 0.0
    %1000 = vmatprep.subr.mxu0 0.0
    %1001 = vmatpush1.msra.mxu0 0.0
    %1002 = vmatprep.subr.mxu0 0.0
    %1003 = vmatpush1.msra.mxu0 0.0
    %1004 = vmatprep.subr.mxu0 0.0
    %1005 = vmatpush1.msra.mxu0 0.0
    %1006 = vmatprep.subr.mxu0 0.0
    %1007 = vmatpush1.msra.mxu0 0.0
    %1008 = vmatprep.subr.mxu0 0.0
    %1009 = vmatpush1.msra.mxu0 0.0
    %1010 = vmatprep.subr.mxu0 0.0
    %1011 = vmatpush1.msra.mxu0 0.0
    %1012 = vmatprep.subr.mxu0 0.0
    %1013 = vmatpush1.msra.mxu0 0.0
    %1014 = vmatprep.subr.mxu0 0.0
    %1015 = vmatpush1.msra.mxu0 0.0
    %1016 = vmatprep.subr.mxu0 0.0
    %1017 = vmatpush1.msra.mxu0 0.0
    %1018 = vmatprep.subr.mxu0 0.0
    %1019 = vmatpush1.msra.mxu0 0.0
    %1020 = vmatprep.subr.mxu0 0.0
    %1021 = vmatpush1.msra.mxu0 0.0
    %1022 = vmatprep.mubr.f32.mxu0 %v814
    %1023 = vmatmul.mubr.f32.gmra.mrb[0].mxu0 %v52
    %v1024 = vpop.f32.mrb[0].mxu0
    %v1025 = vadd.f32 %v681, %v1024
    %v1026 = vpop.f32.mrb[0].mxu0
    %v1027 = vadd.f32 %v685, %v1026
    %1028 = vdwg.mxu0
    %1029 = vmatprep.subr.mxu0 %v61
    %1030 = vmatpush1.msra.mxu0 %v60
    %1031 = vmatprep.subr.mxu0 %v91
    %1032 = vmatpush1.msra.mxu0 %v90
    %1033 = vmatprep.subr.mxu0 %v121
    %1034 = vmatpush1.msra.mxu0 %v120
    %1035 = vmatprep.subr.mxu0 %v151
    %1036 = vmatpush1.msra.mxu0 %v150
    %1037 = vmatprep.subr.mxu0 %v181
    %1038 = vmatpush1.msra.mxu0 %v180
    %1039 = vmatprep.subr.mxu0 %v211
    %1040 = vmatpush1.msra.mxu0 %v210
    %1041 = vmatprep.subr.mxu0 %v241
    %1042 = vmatpush1.msra.mxu0 %v240
    %1043 = vmatprep.subr.mxu0 %v271
    %1044 = vmatpush1.msra.mxu0 %v270
    %1045 = vmatprep.subr.mxu0 %v301
    %1046 = vmatpush1.msra.mxu0 %v300
    %1047 = vmatprep.subr.mxu0 %v331
    %1048 = vmatpush1.msra.mxu0 %v330
    %1049 = vmatprep.subr.mxu0 %v361
    %1050 = vmatpush1.msra.mxu0 %v360
    %1051 = vmatprep.subr.mxu0 %v391
    %1052 = vmatpush1.msra.mxu0 %v390
    %1053 = vmatprep.subr.mxu0 %v421
    %1054 = vmatpush1.msra.mxu0 %v420
    %1055 = vmatprep.subr.mxu0 %v451
    %1056 = vmatpush1.msra.mxu0 %v450
    %1057 = vmatprep.subr.mxu0 %v481
    %1058 = vmatpush1.msra.mxu0 %v480
    %1059 = vmatprep.subr.mxu0 %v511
    %1060 = vmatpush1.msra.mxu0 %v510
    %1061 = vmatprep.subr.mxu0 %v541
    %1062 = vmatpush1.msra.mxu0 %v540
    %1063 = vmatprep.subr.mxu0 %v571
    %1064 = vmatpush1.msra.mxu0 %v570
    %1065 = vmatprep.subr.mxu0 %v601
    %1066 = vmatpush1.msra.mxu0 %v600
    %1067 = vmatprep.subr.mxu0 %v631
    %1068 = vmatpush1.msra.mxu0 %v630
    %1069 = vmatprep.subr.mxu0 0.0
    %1070 = vmatpush1.msra.mxu0 0.0
    %1071 = vmatprep.subr.mxu0 0.0
    %1072 = vmatpush1.msra.mxu0 0.0
    %1073 = vmatprep.subr.mxu0 0.0
    %1074 = vmatpush1.msra.mxu0 0.0
    %1075 = vmatprep.subr.mxu0 0.0
    %1076 = vmatpush1.msra.mxu0 0.0
    %1077 = vmatprep.subr.mxu0 0.0
    %1078 = vmatpush1.msra.mxu0 0.0
    %1079 = vmatprep.subr.mxu0 0.0
    %1080 = vmatpush1.msra.mxu0 0.0
    %1081 = vmatprep.subr.mxu0 0.0
    %1082 = vmatpush1.msra.mxu0 0.0
    %1083 = vmatprep.subr.mxu0 0.0
    %1084 = vmatpush1.msra.mxu0 0.0
    %1085 = vmatprep.subr.mxu0 0.0
    %1086 = vmatpush1.msra.mxu0 0.0
    %1087 = vmatprep.subr.mxu0 0.0
    %1088 = vmatpush1.msra.mxu0 0.0
    %1089 = vmatprep.subr.mxu0 0.0
    %1090 = vmatpush1.msra.mxu0 0.0
    %1091 = vmatprep.subr.mxu0 0.0
    %1092 = vmatpush1.msra.mxu0 0.0
    %1093 = vmatprep.mubr.f32.mxu0 %v814
    %1094 = vmatmul.mubr.f32.gmra.mrb[0].mxu0 %v52
    %v1095 = vpop.f32.mrb[0].mxu0
    %v1096 = vadd.f32 %v689, %v1095
    %v1097 = vpop.f32.mrb[0].mxu0
    %v1098 = vadd.f32 %v693, %v1097
    %1099 = vdwg.mxu0
    %1100 = vmatprep.subr.mxu0 %v63
    %1101 = vmatpush1.msra.mxu0 %v62
    %1102 = vmatprep.subr.mxu0 %v93
    %1103 = vmatpush1.msra.mxu0 %v92
    %1104 = vmatprep.subr.mxu0 %v123
    %1105 = vmatpush1.msra.mxu0 %v122
    %1106 = vmatprep.subr.mxu0 %v153
    %1107 = vmatpush1.msra.mxu0 %v152
    %1108 = vmatprep.subr.mxu0 %v183
    %1109 = vmatpush1.msra.mxu0 %v182
    %1110 = vmatprep.subr.mxu0 %v213
    %1111 = vmatpush1.msra.mxu0 %v212
    %1112 = vmatprep.subr.mxu0 %v243
    %1113 = vmatpush1.msra.mxu0 %v242
    %1114 = vmatprep.subr.mxu0 %v273
    %1115 = vmatpush1.msra.mxu0 %v272
    %1116 = vmatprep.subr.mxu0 %v303
    %1117 = vmatpush1.msra.mxu0 %v302
    %1118 = vmatprep.subr.mxu0 %v333
    %1119 = vmatpush1.msra.mxu0 %v332
    %1120 = vmatprep.subr.mxu0 %v363
    %1121 = vmatpush1.msra.mxu0 %v362
    %1122 = vmatprep.subr.mxu0 %v393
    %1123 = vmatpush1.msra.mxu0 %v392
    %1124 = vmatprep.subr.mxu0 %v423
    %1125 = vmatpush1.msra.mxu0 %v422
    %1126 = vmatprep.subr.mxu0 %v453
    %1127 = vmatpush1.msra.mxu0 %v452
    %1128 = vmatprep.subr.mxu0 %v483
    %1129 = vmatpush1.msra.mxu0 %v482
    %1130 = vmatprep.subr.mxu0 %v513
    %1131 = vmatpush1.msra.mxu0 %v512
    %1132 = vmatprep.subr.mxu0 %v543
    %1133 = vmatpush1.msra.mxu0 %v542
    %1134 = vmatprep.subr.mxu0 %v573
    %1135 = vmatpush1.msra.mxu0 %v572
    %1136 = vmatprep.subr.mxu0 %v603
    %1137 = vmatpush1.msra.mxu0 %v602
    %1138 = vmatprep.subr.mxu0 %v633
    %1139 = vmatpush1.msra.mxu0 %v632
    %1140 = vmatprep.subr.mxu0 0.0
    %1141 = vmatpush1.msra.mxu0 0.0
    %1142 = vmatprep.subr.mxu0 0.0
    %1143 = vmatpush1.msra.mxu0 0.0
    %1144 = vmatprep.subr.mxu0 0.0
    %1145 = vmatpush1.msra.mxu0 0.0
    %1146 = vmatprep.subr.mxu0 0.0
    %1147 = vmatpush1.msra.mxu0 0.0
    %1148 = vmatprep.subr.mxu0 0.0
    %1149 = vmatpush1.msra.mxu0 0.0
    %1150 = vmatprep.subr.mxu0 0.0
    %1151 = vmatpush1.msra.mxu0 0.0
    %1152 = vmatprep.subr.mxu0 0.0
    %1153 = vmatpush1.msra.mxu0 0.0
    %1154 = vmatprep.subr.mxu0 0.0
    %1155 = vmatpush1.msra.mxu0 0.0
    %1156 = vmatprep.subr.mxu0 0.0
    %1157 = vmatpush1.msra.mxu0 0.0
    %1158 = vmatprep.subr.mxu0 0.0
    %1159 = vmatpush1.msra.mxu0 0.0
    %1160 = vmatprep.subr.mxu0 0.0
    %1161 = vmatpush1.msra.mxu0 0.0
    %1162 = vmatprep.subr.mxu0 0.0
    %1163 = vmatpush1.msra.mxu0 0.0
    %1164 = vmatprep.mubr.f32.mxu0 %v814
    %1165 = vmatmul.mubr.f32.gmra.mrb[0].mxu0 %v52
    %v1166 = vpop.f32.mrb[0].mxu0
    %v1167 = vadd.f32 %v697, %v1166
    %v1168 = vpop.f32.mrb[0].mxu0
    %v1169 = vadd.f32 %v701, %v1168
    %1170 = vdwg.mxu0
    %1171 = vmatprep.subr.mxu0 %v65
    %1172 = vmatpush1.msra.mxu0 %v64
    %1173 = vmatprep.subr.mxu0 %v95
    %1174 = vmatpush1.msra.mxu0 %v94
    %1175 = vmatprep.subr.mxu0 %v125
    %1176 = vmatpush1.msra.mxu0 %v124
    %1177 = vmatprep.subr.mxu0 %v155
    %1178 = vmatpush1.msra.mxu0 %v154
    %1179 = vmatprep.subr.mxu0 %v185
    %1180 = vmatpush1.msra.mxu0 %v184
    %1181 = vmatprep.subr.mxu0 %v215
    %1182 = vmatpush1.msra.mxu0 %v214
    %1183 = vmatprep.subr.mxu0 %v245
    %1184 = vmatpush1.msra.mxu0 %v244
    %1185 = vmatprep.subr.mxu0 %v275
    %1186 = vmatpush1.msra.mxu0 %v274
    %1187 = vmatprep.subr.mxu0 %v305
    %1188 = vmatpush1.msra.mxu0 %v304
    %1189 = vmatprep.subr.mxu0 %v335
    %1190 = vmatpush1.msra.mxu0 %v334
    %1191 = vmatprep.subr.mxu0 %v365
    %1192 = vmatpush1.msra.mxu0 %v364
    %1193 = vmatprep.subr.mxu0 %v395
    %1194 = vmatpush1.msra.mxu0 %v394
    %1195 = vmatprep.subr.mxu0 %v425
    %1196 = vmatpush1.msra.mxu0 %v424
    %1197 = vmatprep.subr.mxu0 %v455
    %1198 = vmatpush1.msra.mxu0 %v454
    %1199 = vmatprep.subr.mxu0 %v485
    %1200 = vmatpush1.msra.mxu0 %v484
    %1201 = vmatprep.subr.mxu0 %v515
    %1202 = vmatpush1.msra.mxu0 %v514
    %1203 = vmatprep.subr.mxu0 %v545
    %1204 = vmatpush1.msra.mxu0 %v544
    %1205 = vmatprep.subr.mxu0 %v575
    %1206 = vmatpush1.msra.mxu0 %v574
    %1207 = vmatprep.subr.mxu0 %v605
    %1208 = vmatpush1.msra.mxu0 %v604
    %1209 = vmatprep.subr.mxu0 %v635
    %1210 = vmatpush1.msra.mxu0 %v634
    %1211 = vmatprep.subr.mxu0 0.0
    %1212 = vmatpush1.msra.mxu0 0.0
    %1213 = vmatprep.subr.mxu0 0.0
    %1214 = vmatpush1.msra.mxu0 0.0
    %1215 = vmatprep.subr.mxu0 0.0
    %1216 = vmatpush1.msra.mxu0 0.0
    %1217 = vmatprep.subr.mxu0 0.0
    %1218 = vmatpush1.msra.mxu0 0.0
    %1219 = vmatprep.subr.mxu0 0.0
    %1220 = vmatpush1.msra.mxu0 0.0
    %1221 = vmatprep.subr.mxu0 0.0
    %1222 = vmatpush1.msra.mxu0 0.0
    %1223 = vmatprep.subr.mxu0 0.0
    %1224 = vmatpush1.msra.mxu0 0.0
    %1225 = vmatprep.subr.mxu0 0.0
    %1226 = vmatpush1.msra.mxu0 0.0
    %1227 = vmatprep.subr.mxu0 0.0
    %1228 = vmatpush1.msra.mxu0 0.0
    %1229 = vmatprep.subr.mxu0 0.0
    %1230 = vmatpush1.msra.mxu0 0.0
    %1231 = vmatprep.subr.mxu0 0.0
    %1232 = vmatpush1.msra.mxu0 0.0
    %1233 = vmatprep.subr.mxu0 0.0
    %1234 = vmatpush1.msra.mxu0 0.0
    %1235 = vmatprep.mubr.f32.mxu0 %v814
    %1236 = vmatmul.mubr.f32.gmra.mrb[0].mxu0 %v52
    %v1237 = vpop.f32.mrb[0].mxu0
    %v1238 = vadd.f32 %v705, %v1237
    %v1239 = vpop.f32.mrb[0].mxu0
    %v1240 = vadd.f32 %v709, %v1239
    %1241 = vdwg.mxu0
    %1242 = vmatprep.subr.mxu0 %v67
    %1243 = vmatpush1.msra.mxu0 %v66
    %1244 = vmatprep.subr.mxu0 %v97
    %1245 = vmatpush1.msra.mxu0 %v96
    %1246 = vmatprep.subr.mxu0 %v127
    %1247 = vmatpush1.msra.mxu0 %v126
    %1248 = vmatprep.subr.mxu0 %v157
    %1249 = vmatpush1.msra.mxu0 %v156
    %1250 = vmatprep.subr.mxu0 %v187
    %1251 = vmatpush1.msra.mxu0 %v186
    %1252 = vmatprep.subr.mxu0 %v217
    %1253 = vmatpush1.msra.mxu0 %v216
    %1254 = vmatprep.subr.mxu0 %v247
    %1255 = vmatpush1.msra.mxu0 %v246
    %1256 = vmatprep.subr.mxu0 %v277
    %1257 = vmatpush1.msra.mxu0 %v276
    %1258 = vmatprep.subr.mxu0 %v307
    %1259 = vmatpush1.msra.mxu0 %v306
    %1260 = vmatprep.subr.mxu0 %v337
    %1261 = vmatpush1.msra.mxu0 %v336
    %1262 = vmatprep.subr.mxu0 %v367
    %1263 = vmatpush1.msra.mxu0 %v366
    %1264 = vmatprep.subr.mxu0 %v397
    %1265 = vmatpush1.msra.mxu0 %v396
    %1266 = vmatprep.subr.mxu0 %v427
    %1267 = vmatpush1.msra.mxu0 %v426
    %1268 = vmatprep.subr.mxu0 %v457
    %1269 = vmatpush1.msra.mxu0 %v456
    %1270 = vmatprep.subr.mxu0 %v487
    %1271 = vmatpush1.msra.mxu0 %v486
    %1272 = vmatprep.subr.mxu0 %v517
    %1273 = vmatpush1.msra.mxu0 %v516
    %1274 = vmatprep.subr.mxu0 %v547
    %1275 = vmatpush1.msra.mxu0 %v546
    %1276 = vmatprep.subr.mxu0 %v577
    %1277 = vmatpush1.msra.mxu0 %v576
    %1278 = vmatprep.subr.mxu0 %v607
    %1279 = vmatpush1.msra.mxu0 %v606
    %1280 = vmatprep.subr.mxu0 %v637
    %1281 = vmatpush1.msra.mxu0 %v636
    %1282 = vmatprep.subr.mxu0 0.0
    %1283 = vmatpush1.msra.mxu0 0.0
    %1284 = vmatprep.subr.mxu0 0.0
    %1285 = vmatpush1.msra.mxu0 0.0
    %1286 = vmatprep.subr.mxu0 0.0
    %1287 = vmatpush1.msra.mxu0 0.0
    %1288 = vmatprep.subr.mxu0 0.0
    %1289 = vmatpush1.msra.mxu0 0.0
    %1290 = vmatprep.subr.mxu0 0.0
    %1291 = vmatpush1.msra.mxu0 0.0
    %1292 = vmatprep.subr.mxu0 0.0
    %1293 = vmatpush1.msra.mxu0 0.0
    %1294 = vmatprep.subr.mxu0 0.0
    %1295 = vmatpush1.msra.mxu0 0.0
    %1296 = vmatprep.subr.mxu0 0.0
    %1297 = vmatpush1.msra.mxu0 0.0
    %1298 = vmatprep.subr.mxu0 0.0
    %1299 = vmatpush1.msra.mxu0 0.0
    %1300 = vmatprep.subr.mxu0 0.0
    %1301 = vmatpush1.msra.mxu0 0.0
    %1302 = vmatprep.subr.mxu0 0.0
    %1303 = vmatpush1.msra.mxu0 0.0
    %1304 = vmatprep.subr.mxu0 0.0
    %1305 = vmatpush1.msra.mxu0 0.0
    %1306 = vmatprep.mubr.f32.mxu0 %v814
    %1307 = vmatmul.mubr.f32.gmra.mrb[0].mxu0 %v52
    %v1308 = vpop.f32.mrb[0].mxu0
    %v1309 = vadd.f32 %v713, %v1308
    %v1310 = vpop.f32.mrb[0].mxu0
    %v1311 = vadd.f32 %v717, %v1310
    %1312 = vdwg.mxu0
    %1313 = vmatprep.subr.mxu0 %v69
    %1314 = vmatpush1.msra.mxu0 %v68
    %1315 = vmatprep.subr.mxu0 %v99
    %1316 = vmatpush1.msra.mxu0 %v98
    %1317 = vmatprep.subr.mxu0 %v129
    %1318 = vmatpush1.msra.mxu0 %v128
    %1319 = vmatprep.subr.mxu0 %v159
    %1320 = vmatpush1.msra.mxu0 %v158
    %1321 = vmatprep.subr.mxu0 %v189
    %1322 = vmatpush1.msra.mxu0 %v188
    %1323 = vmatprep.subr.mxu0 %v219
    %1324 = vmatpush1.msra.mxu0 %v218
    %1325 = vmatprep.subr.mxu0 %v249
    %1326 = vmatpush1.msra.mxu0 %v248
    %1327 = vmatprep.subr.mxu0 %v279
    %1328 = vmatpush1.msra.mxu0 %v278
    %1329 = vmatprep.subr.mxu0 %v309
    %1330 = vmatpush1.msra.mxu0 %v308
    %1331 = vmatprep.subr.mxu0 %v339
    %1332 = vmatpush1.msra.mxu0 %v338
    %1333 = vmatprep.subr.mxu0 %v369
    %1334 = vmatpush1.msra.mxu0 %v368
    %1335 = vmatprep.subr.mxu0 %v399
    %1336 = vmatpush1.msra.mxu0 %v398
    %1337 = vmatprep.subr.mxu0 %v429
    %1338 = vmatpush1.msra.mxu0 %v428
    %1339 = vmatprep.subr.mxu0 %v459
    %1340 = vmatpush1.msra.mxu0 %v458
    %1341 = vmatprep.subr.mxu0 %v489
    %1342 = vmatpush1.msra.mxu0 %v488
    %1343 = vmatprep.subr.mxu0 %v519
    %1344 = vmatpush1.msra.mxu0 %v518
    %1345 = vmatprep.subr.mxu0 %v549
    %1346 = vmatpush1.msra.mxu0 %v548
    %1347 = vmatprep.subr.mxu0 %v579
    %1348 = vmatpush1.msra.mxu0 %v578
    %1349 = vmatprep.subr.mxu0 %v609
    %1350 = vmatpush1.msra.mxu0 %v608
    %1351 = vmatprep.subr.mxu0 %v639
    %1352 = vmatpush1.msra.mxu0 %v638
    %1353 = vmatprep.subr.mxu0 0.0
    %1354 = vmatpush1.msra.mxu0 0.0
    %1355 = vmatprep.subr.mxu0 0.0
    %1356 = vmatpush1.msra.mxu0 0.0
    %1357 = vmatprep.subr.mxu0 0.0
    %1358 = vmatpush1.msra.mxu0 0.0
    %1359 = vmatprep.subr.mxu0 0.0
    %1360 = vmatpush1.msra.mxu0 0.0
    %1361 = vmatprep.subr.mxu0 0.0
    %1362 = vmatpush1.msra.mxu0 0.0
    %1363 = vmatprep.subr.mxu0 0.0
    %1364 = vmatpush1.msra.mxu0 0.0
    %1365 = vmatprep.subr.mxu0 0.0
    %1366 = vmatpush1.msra.mxu0 0.0
    %1367 = vmatprep.subr.mxu0 0.0
    %1368 = vmatpush1.msra.mxu0 0.0
    %1369 = vmatprep.subr.mxu0 0.0
    %1370 = vmatpush1.msra.mxu0 0.0
    %1371 = vmatprep.subr.mxu0 0.0
    %1372 = vmatpush1.msra.mxu0 0.0
    %1373 = vmatprep.subr.mxu0 0.0
    %1374 = vmatpush1.msra.mxu0 0.0
    %1375 = vmatprep.subr.mxu0 0.0
    %1376 = vmatpush1.msra.mxu0 0.0
    %1377 = vmatprep.mubr.f32.mxu0 %v814
    %1378 = vmatmul.mubr.f32.gmra.mrb[0].mxu0 %v52
    %v1379 = vpop.f32.mrb[0].mxu0
    %v1380 = vadd.f32 %v721, %v1379
    %v1381 = vpop.f32.mrb[0].mxu0
    %v1382 = vadd.f32 %v725, %v1381
    %1383 = vdwg.mxu0
    %1384 = vmatprep.subr.mxu0 %v71
    %1385 = vmatpush1.msra.mxu0 %v70
    %1386 = vmatprep.subr.mxu0 %v101
    %1387 = vmatpush1.msra.mxu0 %v100
    %1388 = vmatprep.subr.mxu0 %v131
    %1389 = vmatpush1.msra.mxu0 %v130
    %1390 = vmatprep.subr.mxu0 %v161
    %1391 = vmatpush1.msra.mxu0 %v160
    %1392 = vmatprep.subr.mxu0 %v191
    %1393 = vmatpush1.msra.mxu0 %v190
    %1394 = vmatprep.subr.mxu0 %v221
    %1395 = vmatpush1.msra.mxu0 %v220
    %1396 = vmatprep.subr.mxu0 %v251
    %1397 = vmatpush1.msra.mxu0 %v250
    %1398 = vmatprep.subr.mxu0 %v281
    %1399 = vmatpush1.msra.mxu0 %v280
    %1400 = vmatprep.subr.mxu0 %v311
    %1401 = vmatpush1.msra.mxu0 %v310
    %1402 = vmatprep.subr.mxu0 %v341
    %1403 = vmatpush1.msra.mxu0 %v340
    %1404 = vmatprep.subr.mxu0 %v371
    %1405 = vmatpush1.msra.mxu0 %v370
    %1406 = vmatprep.subr.mxu0 %v401
    %1407 = vmatpush1.msra.mxu0 %v400
    %1408 = vmatprep.subr.mxu0 %v431
    %1409 = vmatpush1.msra.mxu0 %v430
    %1410 = vmatprep.subr.mxu0 %v461
    %1411 = vmatpush1.msra.mxu0 %v460
    %1412 = vmatprep.subr.mxu0 %v491
    %1413 = vmatpush1.msra.mxu0 %v490
    %1414 = vmatprep.subr.mxu0 %v521
    %1415 = vmatpush1.msra.mxu0 %v520
    %1416 = vmatprep.subr.mxu0 %v551
    %1417 = vmatpush1.msra.mxu0 %v550
    %1418 = vmatprep.subr.mxu0 %v581
    %1419 = vmatpush1.msra.mxu0 %v580
    %1420 = vmatprep.subr.mxu0 %v611
    %1421 = vmatpush1.msra.mxu0 %v610
    %1422 = vmatprep.subr.mxu0 %v641
    %1423 = vmatpush1.msra.mxu0 %v640
    %1424 = vmatprep.subr.mxu0 0.0
    %1425 = vmatpush1.msra.mxu0 0.0
    %1426 = vmatprep.subr.mxu0 0.0
    %1427 = vmatpush1.msra.mxu0 0.0
    %1428 = vmatprep.subr.mxu0 0.0
    %1429 = vmatpush1.msra.mxu0 0.0
    %1430 = vmatprep.subr.mxu0 0.0
    %1431 = vmatpush1.msra.mxu0 0.0
    %1432 = vmatprep.subr.mxu0 0.0
    %1433 = vmatpush1.msra.mxu0 0.0
    %1434 = vmatprep.subr.mxu0 0.0
    %1435 = vmatpush1.msra.mxu0 0.0
    %1436 = vmatprep.subr.mxu0 0.0
    %1437 = vmatpush1.msra.mxu0 0.0
    %1438 = vmatprep.subr.mxu0 0.0
    %1439 = vmatpush1.msra.mxu0 0.0
    %1440 = vmatprep.subr.mxu0 0.0
    %1441 = vmatpush1.msra.mxu0 0.0
    %1442 = vmatprep.subr.mxu0 0.0
    %1443 = vmatpush1.msra.mxu0 0.0
    %1444 = vmatprep.subr.mxu0 0.0
    %1445 = vmatpush1.msra.mxu0 0.0
    %1446 = vmatprep.subr.mxu0 0.0
    %1447 = vmatpush1.msra.mxu0 0.0
    %1448 = vmatprep.mubr.f32.mxu0 %v814
    %1449 = vmatmul.mubr.f32.gmra.mrb[0].mxu0 %v52
    %v1450 = vpop.f32.mrb[0].mxu0
    %v1451 = vadd.f32 %v729, %v1450
    %v1452 = vpop.f32.mrb[0].mxu0
    %v1453 = vadd.f32 %v733, %v1452
    %1454 = vdwg.mxu0
    %1455 = vmatprep.subr.mxu0 %v73
    %1456 = vmatpush1.msra.mxu0 %v72
    %1457 = vmatprep.subr.mxu0 %v103
    %1458 = vmatpush1.msra.mxu0 %v102
    %1459 = vmatprep.subr.mxu0 %v133
    %1460 = vmatpush1.msra.mxu0 %v132
    %1461 = vmatprep.subr.mxu0 %v163
    %1462 = vmatpush1.msra.mxu0 %v162
    %1463 = vmatprep.subr.mxu0 %v193
    %1464 = vmatpush1.msra.mxu0 %v192
    %1465 = vmatprep.subr.mxu0 %v223
    %1466 = vmatpush1.msra.mxu0 %v222
    %1467 = vmatprep.subr.mxu0 %v253
    %1468 = vmatpush1.msra.mxu0 %v252
    %1469 = vmatprep.subr.mxu0 %v283
    %1470 = vmatpush1.msra.mxu0 %v282
    %1471 = vmatprep.subr.mxu0 %v313
    %1472 = vmatpush1.msra.mxu0 %v312
    %1473 = vmatprep.subr.mxu0 %v343
    %1474 = vmatpush1.msra.mxu0 %v342
    %1475 = vmatprep.subr.mxu0 %v373
    %1476 = vmatpush1.msra.mxu0 %v372
    %1477 = vmatprep.subr.mxu0 %v403
    %1478 = vmatpush1.msra.mxu0 %v402
    %1479 = vmatprep.subr.mxu0 %v433
    %1480 = vmatpush1.msra.mxu0 %v432
    %1481 = vmatprep.subr.mxu0 %v463
    %1482 = vmatpush1.msra.mxu0 %v462
    %1483 = vmatprep.subr.mxu0 %v493
    %1484 = vmatpush1.msra.mxu0 %v492
    %1485 = vmatprep.subr.mxu0 %v523
    %1486 = vmatpush1.msra.mxu0 %v522
    %1487 = vmatprep.subr.mxu0 %v553
    %1488 = vmatpush1.msra.mxu0 %v552
    %1489 = vmatprep.subr.mxu0 %v583
    %1490 = vmatpush1.msra.mxu0 %v582
    %1491 = vmatprep.subr.mxu0 %v613
    %1492 = vmatpush1.msra.mxu0 %v612
    %1493 = vmatprep.subr.mxu0 %v643
    %1494 = vmatpush1.msra.mxu0 %v642
    %1495 = vmatprep.subr.mxu0 0.0
    %1496 = vmatpush1.msra.mxu0 0.0
    %1497 = vmatprep.subr.mxu0 0.0
    %1498 = vmatpush1.msra.mxu0 0.0
    %1499 = vmatprep.subr.mxu0 0.0
    %1500 = vmatpush1.msra.mxu0 0.0
    %1501 = vmatprep.subr.mxu0 0.0
    %1502 = vmatpush1.msra.mxu0 0.0
    %1503 = vmatprep.subr.mxu0 0.0
    %1504 = vmatpush1.msra.mxu0 0.0
    %1505 = vmatprep.subr.mxu0 0.0
    %1506 = vmatpush1.msra.mxu0 0.0
    %1507 = vmatprep.subr.mxu0 0.0
    %1508 = vmatpush1.msra.mxu0 0.0
    %1509 = vmatprep.subr.mxu0 0.0
    %1510 = vmatpush1.msra.mxu0 0.0
    %1511 = vmatprep.subr.mxu0 0.0
    %1512 = vmatpush1.msra.mxu0 0.0
    %1513 = vmatprep.subr.mxu0 0.0
    %1514 = vmatpush1.msra.mxu0 0.0
    %1515 = vmatprep.subr.mxu0 0.0
    %1516 = vmatpush1.msra.mxu0 0.0
    %1517 = vmatprep.subr.mxu0 0.0
    %1518 = vmatpush1.msra.mxu0 0.0
    %1519 = vmatprep.mubr.f32.mxu0 %v814
    %1520 = vmatmul.mubr.f32.gmra.mrb[0].mxu0 %v52
    %v1521 = vpop.f32.mrb[0].mxu0
    %v1522 = vadd.f32 %v737, %v1521
    %v1523 = vpop.f32.mrb[0].mxu0
    %v1524 = vadd.f32 %v741, %v1523
    %1525 = vdwg.mxu0
    %1526 = vmatprep.subr.mxu0 %v75
    %1527 = vmatpush1.msra.mxu0 %v74
    %1528 = vmatprep.subr.mxu0 %v105
    %1529 = vmatpush1.msra.mxu0 %v104
    %1530 = vmatprep.subr.mxu0 %v135
    %1531 = vmatpush1.msra.mxu0 %v134
    %1532 = vmatprep.subr.mxu0 %v165
    %1533 = vmatpush1.msra.mxu0 %v164
    %1534 = vmatprep.subr.mxu0 %v195
    %1535 = vmatpush1.msra.mxu0 %v194
    %1536 = vmatprep.subr.mxu0 %v225
    %1537 = vmatpush1.msra.mxu0 %v224
    %1538 = vmatprep.subr.mxu0 %v255
    %1539 = vmatpush1.msra.mxu0 %v254
    %1540 = vmatprep.subr.mxu0 %v285
    %1541 = vmatpush1.msra.mxu0 %v284
    %1542 = vmatprep.subr.mxu0 %v315
    %1543 = vmatpush1.msra.mxu0 %v314
    %1544 = vmatprep.subr.mxu0 %v345
    %1545 = vmatpush1.msra.mxu0 %v344
    %1546 = vmatprep.subr.mxu0 %v375
    %1547 = vmatpush1.msra.mxu0 %v374
    %1548 = vmatprep.subr.mxu0 %v405
    %1549 = vmatpush1.msra.mxu0 %v404
    %1550 = vmatprep.subr.mxu0 %v435
    %1551 = vmatpush1.msra.mxu0 %v434
    %1552 = vmatprep.subr.mxu0 %v465
    %1553 = vmatpush1.msra.mxu0 %v464
    %1554 = vmatprep.subr.mxu0 %v495
    %1555 = vmatpush1.msra.mxu0 %v494
    %1556 = vmatprep.subr.mxu0 %v525
    %1557 = vmatpush1.msra.mxu0 %v524
    %1558 = vmatprep.subr.mxu0 %v555
    %1559 = vmatpush1.msra.mxu0 %v554
    %1560 = vmatprep.subr.mxu0 %v585
    %1561 = vmatpush1.msra.mxu0 %v584
    %1562 = vmatprep.subr.mxu0 %v615
    %1563 = vmatpush1.msra.mxu0 %v614
    %1564 = vmatprep.subr.mxu0 %v645
    %1565 = vmatpush1.msra.mxu0 %v644
    %1566 = vmatprep.subr.mxu0 0.0
    %1567 = vmatpush1.msra.mxu0 0.0
    %1568 = vmatprep.subr.mxu0 0.0
    %1569 = vmatpush1.msra.mxu0 0.0
    %1570 = vmatprep.subr.mxu0 0.0
    %1571 = vmatpush1.msra.mxu0 0.0
    %1572 = vmatprep.subr.mxu0 0.0
    %1573 = vmatpush1.msra.mxu0 0.0
    %1574 = vmatprep.subr.mxu0 0.0
    %1575 = vmatpush1.msra.mxu0 0.0
    %1576 = vmatprep.subr.mxu0 0.0
    %1577 = vmatpush1.msra.mxu0 0.0
    %1578 = vmatprep.subr.mxu0 0.0
    %1579 = vmatpush1.msra.mxu0 0.0
    %1580 = vmatprep.subr.mxu0 0.0
    %1581 = vmatpush1.msra.mxu0 0.0
    %1582 = vmatprep.subr.mxu0 0.0
    %1583 = vmatpush1.msra.mxu0 0.0
    %1584 = vmatprep.subr.mxu0 0.0
    %1585 = vmatpush1.msra.mxu0 0.0
    %1586 = vmatprep.subr.mxu0 0.0
    %1587 = vmatpush1.msra.mxu0 0.0
    %1588 = vmatprep.subr.mxu0 0.0
    %1589 = vmatpush1.msra.mxu0 0.0
    %1590 = vmatprep.mubr.f32.mxu0 %v814
    %1591 = vmatmul.mubr.f32.gmra.mrb[0].mxu0 %v52
    %v1592 = vpop.f32.mrb[0].mxu0
    %v1593 = vadd.f32 %v745, %v1592
    %v1594 = vpop.f32.mrb[0].mxu0
    %v1595 = vadd.f32 %v749, %v1594
    %1596 = vdwg.mxu0
    %1597 = vmatprep.subr.mxu0 %v77
    %1598 = vmatpush1.msra.mxu0 %v76
    %1599 = vmatprep.subr.mxu0 %v107
    %1600 = vmatpush1.msra.mxu0 %v106
    %1601 = vmatprep.subr.mxu0 %v137
    %1602 = vmatpush1.msra.mxu0 %v136
    %1603 = vmatprep.subr.mxu0 %v167
    %1604 = vmatpush1.msra.mxu0 %v166
    %1605 = vmatprep.subr.mxu0 %v197
    %1606 = vmatpush1.msra.mxu0 %v196
    %1607 = vmatprep.subr.mxu0 %v227
    %1608 = vmatpush1.msra.mxu0 %v226
    %1609 = vmatprep.subr.mxu0 %v257
    %1610 = vmatpush1.msra.mxu0 %v256
    %1611 = vmatprep.subr.mxu0 %v287
    %1612 = vmatpush1.msra.mxu0 %v286
    %1613 = vmatprep.subr.mxu0 %v317
    %1614 = vmatpush1.msra.mxu0 %v316
    %1615 = vmatprep.subr.mxu0 %v347
    %1616 = vmatpush1.msra.mxu0 %v346
    %1617 = vmatprep.subr.mxu0 %v377
    %1618 = vmatpush1.msra.mxu0 %v376
    %1619 = vmatprep.subr.mxu0 %v407
    %1620 = vmatpush1.msra.mxu0 %v406
    %1621 = vmatprep.subr.mxu0 %v437
    %1622 = vmatpush1.msra.mxu0 %v436
    %1623 = vmatprep.subr.mxu0 %v467
    %1624 = vmatpush1.msra.mxu0 %v466
    %1625 = vmatprep.subr.mxu0 %v497
    %1626 = vmatpush1.msra.mxu0 %v496
    %1627 = vmatprep.subr.mxu0 %v527
    %1628 = vmatpush1.msra.mxu0 %v526
    %1629 = vmatprep.subr.mxu0 %v557
    %1630 = vmatpush1.msra.mxu0 %v556
    %1631 = vmatprep.subr.mxu0 %v587
    %1632 = vmatpush1.msra.mxu0 %v586
    %1633 = vmatprep.subr.mxu0 %v617
    %1634 = vmatpush1.msra.mxu0 %v616
    %1635 = vmatprep.subr.mxu0 %v647
    %1636 = vmatpush1.msra.mxu0 %v646
    %1637 = vmatprep.subr.mxu0 0.0
    %1638 = vmatpush1.msra.mxu0 0.0
    %1639 = vmatprep.subr.mxu0 0.0
    %1640 = vmatpush1.msra.mxu0 0.0
    %1641 = vmatprep.subr.mxu0 0.0
    %1642 = vmatpush1.msra.mxu0 0.0
    %1643 = vmatprep.subr.mxu0 0.0
    %1644 = vmatpush1.msra.mxu0 0.0
    %1645 = vmatprep.subr.mxu0 0.0
    %1646 = vmatpush1.msra.mxu0 0.0
    %1647 = vmatprep.subr.mxu0 0.0
    %1648 = vmatpush1.msra.mxu0 0.0
    %1649 = vmatprep.subr.mxu0 0.0
    %1650 = vmatpush1.msra.mxu0 0.0
    %1651 = vmatprep.subr.mxu0 0.0
    %1652 = vmatpush1.msra.mxu0 0.0
    %1653 = vmatprep.subr.mxu0 0.0
    %1654 = vmatpush1.msra.mxu0 0.0
    %1655 = vmatprep.subr.mxu0 0.0
    %1656 = vmatpush1.msra.mxu0 0.0
    %1657 = vmatprep.subr.mxu0 0.0
    %1658 = vmatpush1.msra.mxu0 0.0
    %1659 = vmatprep.subr.mxu0 0.0
    %1660 = vmatpush1.msra.mxu0 0.0
    %1661 = vmatprep.mubr.f32.mxu0 %v814
    %1662 = vmatmul.mubr.f32.gmra.mrb[0].mxu0 %v52
    %v1663 = vpop.f32.mrb[0].mxu0
    %v1664 = vadd.f32 %v753, %v1663
    %v1665 = vpop.f32.mrb[0].mxu0
    %v1666 = vadd.f32 %v757, %v1665
    %1667 = vdwg.mxu0
    %1668 = vmatprep.subr.mxu0 %v79
    %1669 = vmatpush1.msra.mxu0 %v78
    %1670 = vmatprep.subr.mxu0 %v109
    %1671 = vmatpush1.msra.mxu0 %v108
    %1672 = vmatprep.subr.mxu0 %v139
    %1673 = vmatpush1.msra.mxu0 %v138
    %1674 = vmatprep.subr.mxu0 %v169
    %1675 = vmatpush1.msra.mxu0 %v168
    %1676 = vmatprep.subr.mxu0 %v199
    %1677 = vmatpush1.msra.mxu0 %v198
    %1678 = vmatprep.subr.mxu0 %v229
    %1679 = vmatpush1.msra.mxu0 %v228
    %1680 = vmatprep.subr.mxu0 %v259
    %1681 = vmatpush1.msra.mxu0 %v258
    %1682 = vmatprep.subr.mxu0 %v289
    %1683 = vmatpush1.msra.mxu0 %v288
    %1684 = vmatprep.subr.mxu0 %v319
    %1685 = vmatpush1.msra.mxu0 %v318
    %1686 = vmatprep.subr.mxu0 %v349
    %1687 = vmatpush1.msra.mxu0 %v348
    %1688 = vmatprep.subr.mxu0 %v379
    %1689 = vmatpush1.msra.mxu0 %v378
    %1690 = vmatprep.subr.mxu0 %v409
    %1691 = vmatpush1.msra.mxu0 %v408
    %1692 = vmatprep.subr.mxu0 %v439
    %1693 = vmatpush1.msra.mxu0 %v438
    %1694 = vmatprep.subr.mxu0 %v469
    %1695 = vmatpush1.msra.mxu0 %v468
    %1696 = vmatprep.subr.mxu0 %v499
    %1697 = vmatpush1.msra.mxu0 %v498
    %1698 = vmatprep.subr.mxu0 %v529
    %1699 = vmatpush1.msra.mxu0 %v528
    %1700 = vmatprep.subr.mxu0 %v559
    %1701 = vmatpush1.msra.mxu0 %v558
    %1702 = vmatprep.subr.mxu0 %v589
    %1703 = vmatpush1.msra.mxu0 %v588
    %1704 = vmatprep.subr.mxu0 %v619
    %1705 = vmatpush1.msra.mxu0 %v618
    %1706 = vmatprep.subr.mxu0 %v649
    %1707 = vmatpush1.msra.mxu0 %v648
    %1708 = vmatprep.subr.mxu0 0.0
    %1709 = vmatpush1.msra.mxu0 0.0
    %1710 = vmatprep.subr.mxu0 0.0
    %1711 = vmatpush1.msra.mxu0 0.0
    %1712 = vmatprep.subr.mxu0 0.0
    %1713 = vmatpush1.msra.mxu0 0.0
    %1714 = vmatprep.subr.mxu0 0.0
    %1715 = vmatpush1.msra.mxu0 0.0
    %1716 = vmatprep.subr.mxu0 0.0
    %1717 = vmatpush1.msra.mxu0 0.0
    %1718 = vmatprep.subr.mxu0 0.0
    %1719 = vmatpush1.msra.mxu0 0.0
    %1720 = vmatprep.subr.mxu0 0.0
    %1721 = vmatpush1.msra.mxu0 0.0
    %1722 = vmatprep.subr.mxu0 0.0
    %1723 = vmatpush1.msra.mxu0 0.0
    %1724 = vmatprep.subr.mxu0 0.0
    %1725 = vmatpush1.msra.mxu0 0.0
    %1726 = vmatprep.subr.mxu0 0.0
    %1727 = vmatpush1.msra.mxu0 0.0
    %1728 = vmatprep.subr.mxu0 0.0
    %1729 = vmatpush1.msra.mxu0 0.0
    %1730 = vmatprep.subr.mxu0 0.0
    %1731 = vmatpush1.msra.mxu0 0.0
    %1732 = vmatprep.mubr.f32.mxu0 %v814
    %1733 = vmatmul.mubr.f32.gmra.mrb[0].mxu0 %v52
    %v1734 = vpop.f32.mrb[0].mxu0
    %v1735 = vadd.f32 %v761, %v1734
    %v1736 = vpop.f32.mrb[0].mxu0
    %v1737 = vadd.f32 %v765, %v1736
    %1738 = vdwg.mxu0
    %1739 = vmatprep.subr.mxu0 %v81
    %1740 = vmatpush1.msra.mxu0 %v80
    %1741 = vmatprep.subr.mxu0 %v111
    %1742 = vmatpush1.msra.mxu0 %v110
    %1743 = vmatprep.subr.mxu0 %v141
    %1744 = vmatpush1.msra.mxu0 %v140
    %1745 = vmatprep.subr.mxu0 %v171
    %1746 = vmatpush1.msra.mxu0 %v170
    %1747 = vmatprep.subr.mxu0 %v201
    %1748 = vmatpush1.msra.mxu0 %v200
    %1749 = vmatprep.subr.mxu0 %v231
    %1750 = vmatpush1.msra.mxu0 %v230
    %1751 = vmatprep.subr.mxu0 %v261
    %1752 = vmatpush1.msra.mxu0 %v260
    %1753 = vmatprep.subr.mxu0 %v291
    %1754 = vmatpush1.msra.mxu0 %v290
    %1755 = vmatprep.subr.mxu0 %v321
    %1756 = vmatpush1.msra.mxu0 %v320
    %1757 = vmatprep.subr.mxu0 %v351
    %1758 = vmatpush1.msra.mxu0 %v350
    %1759 = vmatprep.subr.mxu0 %v381
    %1760 = vmatpush1.msra.mxu0 %v380
    %1761 = vmatprep.subr.mxu0 %v411
    %1762 = vmatpush1.msra.mxu0 %v410
    %1763 = vmatprep.subr.mxu0 %v441
    %1764 = vmatpush1.msra.mxu0 %v440
    %1765 = vmatprep.subr.mxu0 %v471
    %1766 = vmatpush1.msra.mxu0 %v470
    %1767 = vmatprep.subr.mxu0 %v501
    %1768 = vmatpush1.msra.mxu0 %v500
    %1769 = vmatprep.subr.mxu0 %v531
    %1770 = vmatpush1.msra.mxu0 %v530
    %1771 = vmatprep.subr.mxu0 %v561
    %1772 = vmatpush1.msra.mxu0 %v560
    %1773 = vmatprep.subr.mxu0 %v591
    %1774 = vmatpush1.msra.mxu0 %v590
    %1775 = vmatprep.subr.mxu0 %v621
    %1776 = vmatpush1.msra.mxu0 %v620
    %1777 = vmatprep.subr.mxu0 %v651
    %1778 = vmatpush1.msra.mxu0 %v650
    %1779 = vmatprep.subr.mxu0 0.0
    %1780 = vmatpush1.msra.mxu0 0.0
    %1781 = vmatprep.subr.mxu0 0.0
    %1782 = vmatpush1.msra.mxu0 0.0
    %1783 = vmatprep.subr.mxu0 0.0
    %1784 = vmatpush1.msra.mxu0 0.0
    %1785 = vmatprep.subr.mxu0 0.0
    %1786 = vmatpush1.msra.mxu0 0.0
    %1787 = vmatprep.subr.mxu0 0.0
    %1788 = vmatpush1.msra.mxu0 0.0
    %1789 = vmatprep.subr.mxu0 0.0
    %1790 = vmatpush1.msra.mxu0 0.0
    %1791 = vmatprep.subr.mxu0 0.0
    %1792 = vmatpush1.msra.mxu0 0.0
    %1793 = vmatprep.subr.mxu0 0.0
    %1794 = vmatpush1.msra.mxu0 0.0
    %1795 = vmatprep.subr.mxu0 0.0
    %1796 = vmatpush1.msra.mxu0 0.0
    %1797 = vmatprep.subr.mxu0 0.0
    %1798 = vmatpush1.msra.mxu0 0.0
    %1799 = vmatprep.subr.mxu0 0.0
    %1800 = vmatpush1.msra.mxu0 0.0
    %1801 = vmatprep.subr.mxu0 0.0
    %1802 = vmatpush1.msra.mxu0 0.0
    %1803 = vmatprep.mubr.f32.mxu0 %v814
    %1804 = vmatmul.mubr.f32.gmra.mrb[0].mxu0 %v52
    %v1805 = vpop.f32.mrb[0].mxu0
    %v1806 = vadd.f32 %v769, %v1805
    %v1807 = vpop.f32.mrb[0].mxu0
    %v1808 = vadd.f32 %v773, %v1807
    %1809 = vdwg.mxu0
    %1810 = vmatprep.subr.mxu0 %v83
    %1811 = vmatpush1.msra.mxu0 %v82
    %1812 = vmatprep.subr.mxu0 %v113
    %1813 = vmatpush1.msra.mxu0 %v112
    %1814 = vmatprep.subr.mxu0 %v143
    %1815 = vmatpush1.msra.mxu0 %v142
    %1816 = vmatprep.subr.mxu0 %v173
    %1817 = vmatpush1.msra.mxu0 %v172
    %1818 = vmatprep.subr.mxu0 %v203
    %1819 = vmatpush1.msra.mxu0 %v202
    %1820 = vmatprep.subr.mxu0 %v233
    %1821 = vmatpush1.msra.mxu0 %v232
    %1822 = vmatprep.subr.mxu0 %v263
    %1823 = vmatpush1.msra.mxu0 %v262
    %1824 = vmatprep.subr.mxu0 %v293
    %1825 = vmatpush1.msra.mxu0 %v292
    %1826 = vmatprep.subr.mxu0 %v323
    %1827 = vmatpush1.msra.mxu0 %v322
    %1828 = vmatprep.subr.mxu0 %v353
    %1829 = vmatpush1.msra.mxu0 %v352
    %1830 = vmatprep.subr.mxu0 %v383
    %1831 = vmatpush1.msra.mxu0 %v382
    %1832 = vmatprep.subr.mxu0 %v413
    %1833 = vmatpush1.msra.mxu0 %v412
    %1834 = vmatprep.subr.mxu0 %v443
    %1835 = vmatpush1.msra.mxu0 %v442
    %1836 = vmatprep.subr.mxu0 %v473
    %1837 = vmatpush1.msra.mxu0 %v472
    %1838 = vmatprep.subr.mxu0 %v503
    %1839 = vmatpush1.msra.mxu0 %v502
    %1840 = vmatprep.subr.mxu0 %v533
    %1841 = vmatpush1.msra.mxu0 %v532
    %1842 = vmatprep.subr.mxu0 %v563
    %1843 = vmatpush1.msra.mxu0 %v562
    %1844 = vmatprep.subr.mxu0 %v593
    %1845 = vmatpush1.msra.mxu0 %v592
    %1846 = vmatprep.subr.mxu0 %v623
    %1847 = vmatpush1.msra.mxu0 %v622
    %1848 = vmatprep.subr.mxu0 %v653
    %1849 = vmatpush1.msra.mxu0 %v652
    %1850 = vmatprep.subr.mxu0 0.0
    %1851 = vmatpush1.msra.mxu0 0.0
    %1852 = vmatprep.subr.mxu0 0.0
    %1853 = vmatpush1.msra.mxu0 0.0
    %1854 = vmatprep.subr.mxu0 0.0
    %1855 = vmatpush1.msra.mxu0 0.0
    %1856 = vmatprep.subr.mxu0 0.0
    %1857 = vmatpush1.msra.mxu0 0.0
    %1858 = vmatprep.subr.mxu0 0.0
    %1859 = vmatpush1.msra.mxu0 0.0
    %1860 = vmatprep.subr.mxu0 0.0
    %1861 = vmatpush1.msra.mxu0 0.0
    %1862 = vmatprep.subr.mxu0 0.0
    %1863 = vmatpush1.msra.mxu0 0.0
    %1864 = vmatprep.subr.mxu0 0.0
    %1865 = vmatpush1.msra.mxu0 0.0
    %1866 = vmatprep.subr.mxu0 0.0
    %1867 = vmatpush1.msra.mxu0 0.0
    %1868 = vmatprep.subr.mxu0 0.0
    %1869 = vmatpush1.msra.mxu0 0.0
    %1870 = vmatprep.subr.mxu0 0.0
    %1871 = vmatpush1.msra.mxu0 0.0
    %1872 = vmatprep.subr.mxu0 0.0
    %1873 = vmatpush1.msra.mxu0 0.0
    %1874 = vmatprep.mubr.f32.mxu0 %v814
    %1875 = vmatmul.mubr.f32.gmra.mrb[0].mxu0 %v52
    %v1876 = vpop.f32.mrb[0].mxu0
    %v1877 = vadd.f32 %v777, %v1876
    %v1878 = vpop.f32.mrb[0].mxu0
    %v1879 = vadd.f32 %v781, %v1878
    %1880 = vdwg.mxu0
    %1881 = vst [vmem:[#allocation8] sm:$0xff] %v883
    %1882 = vst [vmem:[#allocation8 + $0x8] sm:$0xff] %v885
    %1883 = vst [vmem:[#allocation8 + $0x10] sm:$0xff] %v954
    %1884 = vst [vmem:[#allocation8 + $0x18] sm:$0xff] %v956
    %1885 = vst [vmem:[#allocation8 + $0x20] sm:$0xff] %v1025
    %1886 = vst [vmem:[#allocation8 + $0x28] sm:$0xff] %v1027
    %1887 = vst [vmem:[#allocation8 + $0x30] sm:$0xff] %v1096
    %1888 = vst [vmem:[#allocation8 + $0x38] sm:$0xff] %v1098
    %1889 = vst [vmem:[#allocation8 + $0x40] sm:$0xff] %v1167
    %1890 = vst [vmem:[#allocation8 + $0x48] sm:$0xff] %v1169
    %1891 = vst [vmem:[#allocation8 + $0x50] sm:$0xff] %v1238
    %1892 = vst [vmem:[#allocation8 + $0x58] sm:$0xff] %v1240
    %1893 = vst [vmem:[#allocation8 + $0x60] sm:$0xff] %v1309
    %1894 = vst [vmem:[#allocation8 + $0x68] sm:$0xff] %v1311
    %1895 = vst [vmem:[#allocation8 + $0x70] sm:$0xff] %v1380
    %1896 = vst [vmem:[#allocation8 + $0x78] sm:$0xff] %v1382
    %1897 = vst [vmem:[#allocation8 + $0x80] sm:$0xff] %v1451
    %1898 = vst [vmem:[#allocation8 + $0x88] sm:$0xff] %v1453
    %1899 = vst [vmem:[#allocation8 + $0x90] sm:$0xff] %v1522
    %1900 = vst [vmem:[#allocation8 + $0x98] sm:$0xff] %v1524
    %1901 = vst [vmem:[#allocation8 + $0xa0] sm:$0xff] %v1593
    %1902 = vst [vmem:[#allocation8 + $0xa8] sm:$0xff] %v1595
    %1903 = vst [vmem:[#allocation8 + $0xb0] sm:$0xff] %v1664
    %1904 = vst [vmem:[#allocation8 + $0xb8] sm:$0xff] %v1666
    %1905 = vst [vmem:[#allocation8 + $0xc0] sm:$0xff] %v1735
    %1906 = vst [vmem:[#allocation8 + $0xc8] sm:$0xff] %v1737
    %1907 = vst [vmem:[#allocation8 + $0xd0] sm:$0xff] %v1806
    %1908 = vst [vmem:[#allocation8 + $0xd8] sm:$0xff] %v1808
    %1909 = vst [vmem:[#allocation8 + $0xe0] sm:$0xff] %v1877
    %1910 = vst [vmem:[#allocation8 + $0xe8] sm:$0xff] %v1879
    // Predicated region
    $region26: #{tpu_custom_call.1} parent=1 // pred_check
      _
    $region27: #{tpu_custom_call.1} parent=1 // pred_check_branch
      %1912 = sbr.rel (0) target = $region29
    $region28: #{tpu_custom_call.1} parent=1 // pred_region
      %s1914 = ssub.s32 3840, 3840
      %1915 = vsyncadd [#allocation4], %s1914
      %s1917 = sshll.u32 [#allocation8], 4
      %s1918 = int_to_ptr.vmem [resolvable:$true] %s1917
      %1920 = dma.vmem_to_hbm [thread:$0]  %s1918, 3840, %s3, [#allocation4]
    $region29: #{tpu_custom_call.1} parent=1 // pred_fallthru
      _
    // Predicated region
    $region30: #{tpu_custom_call.1} parent=1 // pred_check
      _
    $region31: #{tpu_custom_call.1} parent=1 // pred_check_branch
      %1922 = sbr.rel (0) target = $region33
    $region32: #{tpu_custom_call.1} parent=1 // pred_region
      %1923 = dma.done [#allocation4], 3840
    $region33: #{tpu_custom_call.1} parent=1 // pred_fallthru
      _
    %1924 = vsyncpa [#allocation3], 1
    %1925 = vsyncpa [#allocation6], 1
    %1926 = vsyncpa [#allocation4], 1

</llo_original>
